<compile_context>
chip_gen: v7x
topology: tpu7x:2x2x1
jax: 0.10.0
libtpu: 0.0.40
codegen_flags: <defaults>
</compile_context>

<pallas_src>
import math

import jax
import jax.numpy as jnp
from jax import lax
from jax.experimental import pallas as pl
from jax.experimental.pallas import tpu as pltpu


def _round_up(x, m):
    return ((x + m - 1) // m) * m


def _has_megacore():
    """True on chips exposing 2 TensorCores behind one device (v4 / v5p / v7x)."""
    try:
        kind = jax.devices()[0].device_kind.lower()
    except Exception:
        return False
    return any(tag in kind for tag in ("v4", "v5p", "v7", "7x"))


# Per-step batch tile cap.  At bm=4096 with D_in~32 / pred~8 the per-step VMEM
# (double-buffered x + out, resident weights, f32 intermediates) is ~4-6 MiB,
# comfortably inside v5e's 16 MiB / v6e-v7x's 32 MiB scoped-VMEM defaults.
_BM_CAP = 4096


def _pick_block_batch(b128, megacore):
    """b128 = batch rounded up to a multiple of 128.  Returns a lane-dense tile."""
    if megacore and b128 >= 256:
        # >= 2 big tiles so ("parallel",) can shard the grid across both TCs.
        return min(_BM_CAP, _round_up(-(-b128 // 2), 128))
    # Single-TensorCore chips: one big step whenever it fits — extra grid steps
    # are pure per-step overhead there.
    return min(_BM_CAP, b128)


def mlp_forecast_kernel(x_ref, w1_ref, b1_ref, w2_ref, b2_ref, w3_ref, b3_ref, o_ref):
    """Fused 3-layer MLP with transposed (features x batch) activations.

    x_ref : (bm, D_in)  f32, natural HBM layout (no wrapper transpose)
    wK_ref: (out, in)   compute dtype (PyTorch nn.Linear weight layout)
    bK_ref: (out, 1)    f32
    o_ref : (pred, bm)  f32  (lane-dense: batch on the lane dim)
    """
    cdt = w1_ref.dtype
    prec = lax.Precision.HIGHEST if cdt == jnp.float32 else lax.Precision.DEFAULT

    x = x_ref[...].astype(cdt)                                   # cast in VMEM only
    # Layer 1: contract on x's feature axis -> (128, bm); the (bm, D_in)
    # transpose happens on the XLU inside the kernel.
    h1 = lax.dot_general(w1_ref[...], x,
                         dimension_numbers=(((1,), (1,)), ((), ())),
                         precision=prec, preferred_element_type=jnp.float32)
    h1 = jnp.maximum(h1 + b1_ref[...], 0.0)                      # bias+ReLU in f32
    # Layer 2: (64,128) @ (128,bm) -> (64,bm)
    h2 = jnp.dot(w2_ref[...], h1.astype(cdt),
                 precision=prec, preferred_element_type=jnp.float32)
    h2 = jnp.maximum(h2 + b2_ref[...], 0.0)
    # Layer 3: (pred,64) @ (64,bm) -> (pred,bm)
    out = jnp.dot(w3_ref[...], h2.astype(cdt),
                  precision=prec, preferred_element_type=jnp.float32)
    o_ref[...] = (out + b3_ref[...]).astype(o_ref.dtype)         # lane-dense store


def mlp_forecast(x, params, *, block_batch=None, compute_dtype=jnp.float32):
    """x: (B, S, F) float32 -> (B, pred_seq_len, 1) float32.

    params follow the PyTorch nn.Linear convention: w (out_features, in_features),
    b (out_features,).  compute_dtype controls the matmul-operand dtype
    (jnp.bfloat16 recommended on v6e/v7x); accumulation / bias / ReLU stay f32.
    """
    w1, b1, w2, b2, w3, b3 = params
    B = x.shape[0]
    d_in = w1.shape[1]
    pred = w3.shape[0]

    # Same flatten order as torch .view — a free contiguous reshape (no transpose,
    # no cast, no extra HBM pass on x).
    x2d = x.reshape(B, d_in)

    b128 = _round_up(max(B, 1), 128)
    bm = _pick_block_batch(b128, _has_megacore()) if block_batch is None else block_batch
    assert bm % 128 == 0, "block_batch must be a multiple of 128 (lane width)"
    b_pad = _round_up(b128, bm)
    if b_pad != B:
        # Padded rows produce relu(bias) garbage in the padded output columns;
        # they are sliced off below and must never be reduced over in-kernel.
        x2d = jnp.pad(x2d, ((0, b_pad - B), (0, 0)))

    w1c = w1.astype(compute_dtype)
    w2c = w2.astype(compute_dtype)
    w3c = w3.astype(compute_dtype)
    b1c = b1.reshape(-1, 1).astype(jnp.float32)
    b2c = b2.reshape(-1, 1).astype(jnp.float32)
    b3c = b3.reshape(-1, 1).astype(jnp.float32)

    grid = (b_pad // bm,)

    w_itemsize = jnp.dtype(compute_dtype).itemsize
    flops = 2 * b_pad * (d_in * 128 + 128 * 64 + 64 * pred)
    bytes_accessed = (b_pad * d_in * 4                                 # x (f32 in HBM)
                      + b_pad * pred * 4                               # output
                      + (128 * d_in + 64 * 128 + pred * 64) * w_itemsize   # weights
                      + (128 + 64 + pred) * 4)                         # biases
    cost = pl.CostEstimate(flops=flops, transcendentals=0,
                           bytes_accessed=bytes_accessed)

    out_t = pl.pallas_call(
        mlp_forecast_kernel,
        out_shape=jax.ShapeDtypeStruct((pred, b_pad), jnp.float32),
        grid_spec=pltpu.PrefetchScalarGridSpec(
            num_scalar_prefetch=0,
            grid=grid,
            in_specs=[
                pl.BlockSpec((bm, d_in), lambda i: (i, 0)),   # x: natural layout
                pl.BlockSpec(w1c.shape, lambda i: (0, 0)),    # weights/biases resident
                pl.BlockSpec(b1c.shape, lambda i: (0, 0)),
                pl.BlockSpec(w2c.shape, lambda i: (0, 0)),
                pl.BlockSpec(b2c.shape, lambda i: (0, 0)),
                pl.BlockSpec(w3c.shape, lambda i: (0, 0)),
                pl.BlockSpec(b3c.shape, lambda i: (0, 0)),
            ],
            out_specs=pl.BlockSpec((pred, bm), lambda i: (0, i)),  # lane-dense output
        ),
        compiler_params=pltpu.CompilerParams(
            dimension_semantics=("parallel",)),
        cost_estimate=cost,
    )(x2d, w1c, b1c, w2c, b2c, w3c, b3c)

    # Layout plumbing back to the PyTorch output convention (pred is tiny, cheap).
    return out_t[:, :B].T[:, :, None]                             # (B, pred, 1)


def init_params(key, input_seq_len, num_features, pred_seq_len):
    """Deterministic init mimicking torch.nn.Linear defaults (PyTorch weight layout)."""
    d_in = input_seq_len * num_features
    dims = [(d_in, 128), (128, 64), (64, pred_seq_len)]
    params = []
    for fan_in, fan_out in dims:
        key, kw, kb = jax.random.split(key, 3)
        bound = 1.0 / math.sqrt(fan_in)
        w = jax.random.uniform(kw, (fan_out, fan_in), jnp.float32, -bound, bound)
        b = jax.random.uniform(kb, (fan_out,), jnp.float32, -bound, bound)
        params += [w, b]
    return tuple(params)


def _reference(x, params):
    w1, b1, w2, b2, w3, b3 = params
    x2d = x.reshape(x.shape[0], -1)
    h = jnp.maximum(x2d @ w1.T + b1, 0.0)
    h = jnp.maximum(h @ w2.T + b2, 0.0)
    return (h @ w3.T + b3)[:, :, None]


if __name__ == "__main__":
    input_seq_len, num_features, pred_seq_len = 8, 4, 8
    batch = 8

    key = jax.random.PRNGKey(0)
    key, kx = jax.random.split(key)
    x = jax.random.normal(kx, (batch, input_seq_len, num_features), jnp.float32)
    params = init_params(key, input_seq_len, num_features, pred_seq_len)

    ref = _reference(x, params)

    # f32 path (precision=HIGHEST): matches PyTorch f32 semantics.
    out_f32 = jax.block_until_ready(mlp_forecast(x, params))
    assert out_f32.shape == (batch, pred_seq_len, 1)
    assert jnp.allclose(out_f32, ref, atol=1e-5, rtol=1e-5)

    # bf16 matmul-operand path (recommended on v6e/v7x): looser tolerance.
    out_bf16 = jax.block_until_ready(
        mlp_forecast(x, params, compute_dtype=jnp.bfloat16))
    assert out_bf16.shape == (batch, pred_seq_len, 1)
    assert jnp.allclose(out_bf16, ref, atol=5e-2, rtol=5e-2)

    # Multi-tile grid path (forces 3 grid steps) to exercise the index maps.
    key, kx2 = jax.random.split(key)
    x_big = jax.random.normal(kx2, (384, input_seq_len, num_features), jnp.float32)
    ref_big = _reference(x_big, params)
    out_big = jax.block_until_ready(
        mlp_forecast(x_big, params, block_batch=128))
    assert out_big.shape == (384, pred_seq_len, 1)
    assert jnp.allclose(out_big, ref_big, atol=1e-5, rtol=1e-5)

    print("KERNEL_OK")
</pallas_src>

<mosaic_0001>
module attributes {stable_mosaic.version = 11 : i64} {
  func.func @mlp_forecast_kernel(%arg0: i32, %arg1: memref<128x32xf32, #tpu.memory_space<vmem>>, %arg2: memref<128x32xf32, #tpu.memory_space<vmem>>, %arg3: memref<128x1xf32, #tpu.memory_space<vmem>>, %arg4: memref<64x128xf32, #tpu.memory_space<vmem>>, %arg5: memref<64x1xf32, #tpu.memory_space<vmem>>, %arg6: memref<8x64xf32, #tpu.memory_space<vmem>>, %arg7: memref<8x1xf32, #tpu.memory_space<vmem>>, %arg8: memref<8x128xf32, #tpu.memory_space<vmem>>) attributes {dimension_semantics = [#tpu.dimension_semantics<parallel>], iteration_bounds = array<i64: 1>, scalar_prefetch = 0 : i64, scratch_operands = 0 : i64, tpu.core_type = #tpu.core_type<tc>, window_params = [{transform_indices = @transform_0, window_bounds = array<i64: 128, 32>}, {pipeline_mode = #tpu.pipeline_mode<synchronous>, transform_indices = @transform_1, window_bounds = array<i64: 128, 32>}, {pipeline_mode = #tpu.pipeline_mode<synchronous>, transform_indices = @transform_2, window_bounds = array<i64: 128, 1>}, {pipeline_mode = #tpu.pipeline_mode<synchronous>, transform_indices = @transform_3, window_bounds = array<i64: 64, 128>}, {pipeline_mode = #tpu.pipeline_mode<synchronous>, transform_indices = @transform_4, window_bounds = array<i64: 64, 1>}, {pipeline_mode = #tpu.pipeline_mode<synchronous>, transform_indices = @transform_5, window_bounds = array<i64: 8, 64>}, {pipeline_mode = #tpu.pipeline_mode<synchronous>, transform_indices = @transform_6, window_bounds = array<i64: 8, 1>}, {transform_indices = @transform_7, window_bounds = array<i64: 8, 128>}]} {
    %c0 = arith.constant 0 : index
    %c0_0 = arith.constant 0 : index
    %0 = vector.load %arg1[%c0, %c0_0] : memref<128x32xf32, #tpu.memory_space<vmem>>, vector<128x32xf32>
    %c0_1 = arith.constant 0 : index
    %c0_2 = arith.constant 0 : index
    %1 = vector.load %arg2[%c0_1, %c0_2] : memref<128x32xf32, #tpu.memory_space<vmem>>, vector<128x32xf32>
    %cst = arith.constant dense<0.000000e+00> : vector<128x128xf32>
    %2 = tpu.matmul %1, %0, %cst {dimension_numbers = #tpu.dot_dimension_numbers<[1], [1], [0], [0], [0, 0, 1, 0], [], []>, precision = #tpu.contract_precision<fp32>} : vector<128x32xf32>, vector<128x32xf32>, vector<128x128xf32> -> vector<128x128xf32>
    %c0_3 = arith.constant 0 : index
    %c0_4 = arith.constant 0 : index
    %3 = vector.load %arg3[%c0_3, %c0_4] : memref<128x1xf32, #tpu.memory_space<vmem>>, vector<128x1xf32>
    %4 = vector.broadcast %3 : vector<128x1xf32> to vector<128x128xf32>
    %5 = arith.addf %2, %4 : vector<128x128xf32>
    %cst_5 = arith.constant 0.000000e+00 : f32
    %6 = vector.broadcast %cst_5 : f32 to vector<128x128xf32>
    %7 = arith.maximumf %5, %6 : vector<128x128xf32>
    %c0_6 = arith.constant 0 : index
    %c0_7 = arith.constant 0 : index
    %8 = vector.load %arg4[%c0_6, %c0_7] : memref<64x128xf32, #tpu.memory_space<vmem>>, vector<64x128xf32>
    %cst_8 = arith.constant dense<0.000000e+00> : vector<64x128xf32>
    %9 = tpu.matmul %8, %7, %cst_8 {dimension_numbers = #tpu.dot_dimension_numbers<[1], [0], [0], [1], [0, 0, 1, 1], [], []>, precision = #tpu.contract_precision<fp32>} : vector<64x128xf32>, vector<128x128xf32>, vector<64x128xf32> -> vector<64x128xf32>
    %c0_9 = arith.constant 0 : index
    %c0_10 = arith.constant 0 : index
    %10 = vector.load %arg5[%c0_9, %c0_10] : memref<64x1xf32, #tpu.memory_space<vmem>>, vector<64x1xf32>
    %11 = vector.broadcast %10 : vector<64x1xf32> to vector<64x128xf32>
    %12 = arith.addf %9, %11 : vector<64x128xf32>
    %cst_11 = arith.constant 0.000000e+00 : f32
    %13 = vector.broadcast %cst_11 : f32 to vector<64x128xf32>
    %14 = arith.maximumf %12, %13 : vector<64x128xf32>
    %c0_12 = arith.constant 0 : index
    %c0_13 = arith.constant 0 : index
    %15 = vector.load %arg6[%c0_12, %c0_13] : memref<8x64xf32, #tpu.memory_space<vmem>>, vector<8x64xf32>
    %cst_14 = arith.constant dense<0.000000e+00> : vector<8x128xf32>
    %16 = tpu.matmul %15, %14, %cst_14 {dimension_numbers = #tpu.dot_dimension_numbers<[1], [0], [0], [1], [0, 0, 1, 1], [], []>, precision = #tpu.contract_precision<fp32>} : vector<8x64xf32>, vector<64x128xf32>, vector<8x128xf32> -> vector<8x128xf32>
    %c0_15 = arith.constant 0 : index
    %c0_16 = arith.constant 0 : index
    %17 = vector.load %arg7[%c0_15, %c0_16] : memref<8x1xf32, #tpu.memory_space<vmem>>, vector<8x1xf32>
    %18 = vector.broadcast %17 : vector<8x1xf32> to vector<8x128xf32>
    %19 = arith.addf %16, %18 : vector<8x128xf32>
    %c0_17 = arith.constant 0 : index
    %c0_18 = arith.constant 0 : index
    %20 = vector.load %arg8[%c0_17, %c0_18] : memref<8x128xf32, #tpu.memory_space<vmem>>, vector<8x128xf32>
    tpu.vector_store %arg8[%c0_17, %c0_18], %19 {strides = array<i32>} : memref<8x128xf32, #tpu.memory_space<vmem>>, vector<8x128xf32>,
    return
  }
  func.func @transform_0(%arg0: i32) -> (i32, i32) {
    %c0_i32 = arith.constant 0 : i32
    %c0_i32_0 = arith.constant 0 : i32
    return %arg0, %c0_i32 : i32, i32
  }
  func.func @transform_1(%arg0: i32) -> (i32, i32) {
    %c0_i32 = arith.constant 0 : i32
    %c0_i32_0 = arith.constant 0 : i32
    %c0_i32_1 = arith.constant 0 : i32
    return %c0_i32, %c0_i32_0 : i32, i32
  }
  func.func @transform_2(%arg0: i32) -> (i32, i32) {
    %c0_i32 = arith.constant 0 : i32
    %c0_i32_0 = arith.constant 0 : i32
    %c0_i32_1 = arith.constant 0 : i32
    return %c0_i32, %c0_i32_0 : i32, i32
  }
  func.func @transform_3(%arg0: i32) -> (i32, i32) {
    %c0_i32 = arith.constant 0 : i32
    %c0_i32_0 = arith.constant 0 : i32
    %c0_i32_1 = arith.constant 0 : i32
    return %c0_i32, %c0_i32_0 : i32, i32
  }
  func.func @transform_4(%arg0: i32) -> (i32, i32) {
    %c0_i32 = arith.constant 0 : i32
    %c0_i32_0 = arith.constant 0 : i32
    %c0_i32_1 = arith.constant 0 : i32
    return %c0_i32, %c0_i32_0 : i32, i32
  }
  func.func @transform_5(%arg0: i32) -> (i32, i32) {
    %c0_i32 = arith.constant 0 : i32
    %c0_i32_0 = arith.constant 0 : i32
    %c0_i32_1 = arith.constant 0 : i32
    return %c0_i32, %c0_i32_0 : i32, i32
  }
  func.func @transform_6(%arg0: i32) -> (i32, i32) {
    %c0_i32 = arith.constant 0 : i32
    %c0_i32_0 = arith.constant 0 : i32
    %c0_i32_1 = arith.constant 0 : i32
    return %c0_i32, %c0_i32_0 : i32, i32
  }
  func.func @transform_7(%arg0: i32) -> (i32, i32) {
    %c0_i32 = arith.constant 0 : i32
    %c0_i32_0 = arith.constant 0 : i32
    return %c0_i32, %arg0 : i32, i32
  }
}

</mosaic_0001>

<llo_original>
// kernel: tpu_custom_call.1
$region0: #{tpu_custom_call.1}
  #allocation0 [shape = 'u32[]', space=smem, size = 0x4, offset = 0x4, fixed_abs, tag = 'smem constant byte address 0x4 - core index']
  #allocation1 [shape = 'u32[144,128]{1,0:T(1,128)}', space=vmem, size = 0x12000, scoped, tag = 'internal scratch']
  %s0 = inlined_call_operand.vmem [shape: f32[128,32], index: 0, kind: input, shape index: {}]
  %s1 = inlined_call_operand.vmem [shape: f32[128,32], index: 1, kind: input, shape index: {}]
  %s2 = inlined_call_operand.vmem [shape: f32[128,1], index: 2, kind: input, shape index: {}]
  %s3 = inlined_call_operand.vmem [shape: f32[64,128], index: 3, kind: input, shape index: {}]
  %s4 = inlined_call_operand.vmem [shape: f32[64,1], index: 4, kind: input, shape index: {}]
  %s5 = inlined_call_operand.vmem [shape: f32[8,64], index: 5, kind: input, shape index: {}]
  %s6 = inlined_call_operand.vmem [shape: f32[8,1], index: 6, kind: input, shape index: {}]
  %s7 = inlined_call_operand.hbm [shape: f32[8,128], index: 7, kind: output, shape index: {}]
  %s8 = sld [smem:[#allocation0]]
  $region38: #{tpu_custom_call.1} parent=0
    _
  %s10 = ssub.s32 1, %s8
  %s11 = scalar_select 0, %s10, %s8
  $region1: #{tpu_custom_call.1} parent=0
    #allocation2 [shape = 'u8[4096]{0}', space=vmem, size = 0x1000, scoped, tag = 'output window, operand 0, single buffered']
    #allocation3 [shape = 's32[1]{0}', space=sflag, size = 0x4, scoped, tag = 'scoped memory for tpu_custom_call.1']
    %12 = vsyncpa [#allocation3], 0
    // Predicated region
    $region2: #{tpu_custom_call.1} parent=1 // pred_check
      _
    $region3: #{tpu_custom_call.1} parent=1 // pred_check_branch
      %14 = sbr.rel (0) target = $region5
    $region4: #{tpu_custom_call.1} parent=1 // pred_region
      _
    $region5: #{tpu_custom_call.1} parent=1 // pred_fallthru
      _
    // Predicated region
    $region6: #{tpu_custom_call.1} parent=1 // pred_check
      _
    $region7: #{tpu_custom_call.1} parent=1 // pred_check_branch
      %16 = sbr.rel (0) target = $region9
    $region8: #{tpu_custom_call.1} parent=1 // pred_region
      _
    $region9: #{tpu_custom_call.1} parent=1 // pred_fallthru
      _
    // Predicated region
    $region10: #{tpu_custom_call.1} parent=1 // pred_check
      _
    $region11: #{tpu_custom_call.1} parent=1 // pred_check_branch
      %18 = sbr.rel (0) target = $region13
    $region12: #{tpu_custom_call.1} parent=1 // pred_region
      _
    $region13: #{tpu_custom_call.1} parent=1 // pred_fallthru
      _
    // Predicated region
    $region14: #{tpu_custom_call.1} parent=1 // pred_check
      _
    $region15: #{tpu_custom_call.1} parent=1 // pred_check_branch
      %20 = sbr.rel (0) target = $region17
    $region16: #{tpu_custom_call.1} parent=1 // pred_region
      _
    $region17: #{tpu_custom_call.1} parent=1 // pred_fallthru
      _
    // Predicated region
    $region18: #{tpu_custom_call.1} parent=1 // pred_check
      _
    $region19: #{tpu_custom_call.1} parent=1 // pred_check_branch
      %22 = sbr.rel (0) target = $region21
    $region20: #{tpu_custom_call.1} parent=1 // pred_region
      _
    $region21: #{tpu_custom_call.1} parent=1 // pred_fallthru
      _
    // Predicated region
    $region22: #{tpu_custom_call.1} parent=1 // pred_check
      _
    $region23: #{tpu_custom_call.1} parent=1 // pred_check_branch
      %24 = sbr.rel (0) target = $region25
    $region24: #{tpu_custom_call.1} parent=1 // pred_region
      _
    $region25: #{tpu_custom_call.1} parent=1 // pred_fallthru
      _
    // Predicated region
    $region26: #{tpu_custom_call.1} parent=1 // pred_check
      _
    $region27: #{tpu_custom_call.1} parent=1 // pred_check_branch
      %26 = sbr.rel (0) target = $region29
    $region28: #{tpu_custom_call.1} parent=1 // pred_region
      _
    $region29: #{tpu_custom_call.1} parent=1 // pred_fallthru
      _
    %v27 = vld [vmem:[%s0] sm:$0xff]
    %v28 = vld [vmem:[%s0 + $0x8] sm:$0xff]
    %v29 = vld [vmem:[%s0 + $0x10] sm:$0xff]
    %v30 = vld [vmem:[%s0 + $0x18] sm:$0xff]
    %v31 = vld [vmem:[%s0 + $0x20] sm:$0xff]
    %v32 = vld [vmem:[%s0 + $0x28] sm:$0xff]
    %v33 = vld [vmem:[%s0 + $0x30] sm:$0xff]
    %v34 = vld [vmem:[%s0 + $0x38] sm:$0xff]
    %v35 = vld [vmem:[%s0 + $0x40] sm:$0xff]
    %v36 = vld [vmem:[%s0 + $0x48] sm:$0xff]
    %v37 = vld [vmem:[%s0 + $0x50] sm:$0xff]
    %v38 = vld [vmem:[%s0 + $0x58] sm:$0xff]
    %v39 = vld [vmem:[%s0 + $0x60] sm:$0xff]
    %v40 = vld [vmem:[%s0 + $0x68] sm:$0xff]
    %v41 = vld [vmem:[%s0 + $0x70] sm:$0xff]
    %v42 = vld [vmem:[%s0 + $0x78] sm:$0xff]
    %v43 = vld [vmem:[%s1] sm:$0xff]
    %v44 = vld [vmem:[%s1 + $0x8] sm:$0xff]
    %v45 = vld [vmem:[%s1 + $0x10] sm:$0xff]
    %v46 = vld [vmem:[%s1 + $0x18] sm:$0xff]
    %v47 = vld [vmem:[%s1 + $0x20] sm:$0xff]
    %v48 = vld [vmem:[%s1 + $0x28] sm:$0xff]
    %v49 = vld [vmem:[%s1 + $0x30] sm:$0xff]
    %v50 = vld [vmem:[%s1 + $0x38] sm:$0xff]
    %v51 = vld [vmem:[%s1 + $0x40] sm:$0xff]
    %v52 = vld [vmem:[%s1 + $0x48] sm:$0xff]
    %v53 = vld [vmem:[%s1 + $0x50] sm:$0xff]
    %v54 = vld [vmem:[%s1 + $0x58] sm:$0xff]
    %v55 = vld [vmem:[%s1 + $0x60] sm:$0xff]
    %v56 = vld [vmem:[%s1 + $0x68] sm:$0xff]
    %v57 = vld [vmem:[%s1 + $0x70] sm:$0xff]
    %v58 = vld [vmem:[%s1 + $0x78] sm:$0xff]
    %v59 = vld [vmem:[%s2] sm:$0xff]
    %v60 = vld [vmem:[%s2 + $0x8] sm:$0xff]
    %v61 = vld [vmem:[%s2 + $0x10] sm:$0xff]
    %v62 = vld [vmem:[%s2 + $0x18] sm:$0xff]
    %v63 = vld [vmem:[%s2 + $0x20] sm:$0xff]
    %v64 = vld [vmem:[%s2 + $0x28] sm:$0xff]
    %v65 = vld [vmem:[%s2 + $0x30] sm:$0xff]
    %v66 = vld [vmem:[%s2 + $0x38] sm:$0xff]
    %v67 = vld [vmem:[%s2 + $0x40] sm:$0xff]
    %v68 = vld [vmem:[%s2 + $0x48] sm:$0xff]
    %v69 = vld [vmem:[%s2 + $0x50] sm:$0xff]
    %v70 = vld [vmem:[%s2 + $0x58] sm:$0xff]
    %v71 = vld [vmem:[%s2 + $0x60] sm:$0xff]
    %v72 = vld [vmem:[%s2 + $0x68] sm:$0xff]
    %v73 = vld [vmem:[%s2 + $0x70] sm:$0xff]
    %v74 = vld [vmem:[%s2 + $0x78] sm:$0xff]
    %76 = vset.pattern.permute.xlu0 0
    %77 = vperm.xlu0 %76, %v59
    %v78 = vpop.permute.xlu0 %77
    %81 = vset.pattern.permute.xlu0 0
    %82 = vperm.xlu0 %81, %v60
    %v83 = vpop.permute.xlu0 %82
    %86 = vset.pattern.permute.xlu0 0
    %87 = vperm.xlu0 %86, %v61
    %v88 = vpop.permute.xlu0 %87
    %91 = vset.pattern.permute.xlu0 0
    %92 = vperm.xlu0 %91, %v62
    %v93 = vpop.permute.xlu0 %92
    %96 = vset.pattern.permute.xlu0 0
    %97 = vperm.xlu0 %96, %v63
    %v98 = vpop.permute.xlu0 %97
    %101 = vset.pattern.permute.xlu0 0
    %102 = vperm.xlu0 %101, %v64
    %v103 = vpop.permute.xlu0 %102
    %106 = vset.pattern.permute.xlu0 0
    %107 = vperm.xlu0 %106, %v65
    %v108 = vpop.permute.xlu0 %107
    %111 = vset.pattern.permute.xlu0 0
    %112 = vperm.xlu0 %111, %v66
    %v113 = vpop.permute.xlu0 %112
    %116 = vset.pattern.permute.xlu0 0
    %117 = vperm.xlu0 %116, %v67
    %v118 = vpop.permute.xlu0 %117
    %121 = vset.pattern.permute.xlu0 0
    %122 = vperm.xlu0 %121, %v68
    %v123 = vpop.permute.xlu0 %122
    %126 = vset.pattern.permute.xlu0 0
    %127 = vperm.xlu0 %126, %v69
    %v128 = vpop.permute.xlu0 %127
    %131 = vset.pattern.permute.xlu0 0
    %132 = vperm.xlu0 %131, %v70
    %v133 = vpop.permute.xlu0 %132
    %136 = vset.pattern.permute.xlu0 0
    %137 = vperm.xlu0 %136, %v71
    %v138 = vpop.permute.xlu0 %137
    %141 = vset.pattern.permute.xlu0 0
    %142 = vperm.xlu0 %141, %v72
    %v143 = vpop.permute.xlu0 %142
    %146 = vset.pattern.permute.xlu0 0
    %147 = vperm.xlu0 %146, %v73
    %v148 = vpop.permute.xlu0 %147
    %151 = vset.pattern.permute.xlu0 0
    %152 = vperm.xlu0 %151, %v74
    %v153 = vpop.permute.xlu0 %152
    %vm155 = vcmask 261120
    %v157 = vsel %vm155, %v43, 0
    %v160 = vsel %vm155, %v44, 0
    %v163 = vsel %vm155, %v45, 0
    %v166 = vsel %vm155, %v46, 0
    %v169 = vsel %vm155, %v47, 0
    %v172 = vsel %vm155, %v48, 0
    %v175 = vsel %vm155, %v49, 0
    %v178 = vsel %vm155, %v50, 0
    %v181 = vsel %vm155, %v51, 0
    %v184 = vsel %vm155, %v52, 0
    %v187 = vsel %vm155, %v53, 0
    %v190 = vsel %vm155, %v54, 0
    %v193 = vsel %vm155, %v55, 0
    %v196 = vsel %vm155, %v56, 0
    %v199 = vsel %vm155, %v57, 0
    %v202 = vsel %vm155, %v58, 0
    %v205 = vsel %vm155, %v27, 0
    %v208 = vsel %vm155, %v28, 0
    %v211 = vsel %vm155, %v29, 0
    %v214 = vsel %vm155, %v30, 0
    %v217 = vsel %vm155, %v31, 0
    %v220 = vsel %vm155, %v32, 0
    %v223 = vsel %vm155, %v33, 0
    %v226 = vsel %vm155, %v34, 0
    %v229 = vsel %vm155, %v35, 0
    %v232 = vsel %vm155, %v36, 0
    %v235 = vsel %vm155, %v37, 0
    %v238 = vsel %vm155, %v38, 0
    %v241 = vsel %vm155, %v39, 0
    %v244 = vsel %vm155, %v40, 0
    %v247 = vsel %vm155, %v41, 0
    %v250 = vsel %vm155, %v42, 0
    %252 = vmatprep.subr.mxu0 0.0
    %v253 = vand.u32 %v205, 4294901760
    %254 = vmatpush1.xpose.msra.mxu0 %v253
    %255 = vmatprep.subr.mxu0 0.0
    %v256 = vand.u32 %v208, 4294901760
    %257 = vmatpush1.xpose.msra.mxu0 %v256
    %258 = vmatprep.subr.mxu0 0.0
    %v259 = vand.u32 %v211, 4294901760
    %260 = vmatpush1.xpose.msra.mxu0 %v259
    %261 = vmatprep.subr.mxu0 0.0
    %v262 = vand.u32 %v214, 4294901760
    %263 = vmatpush1.xpose.msra.mxu0 %v262
    %264 = vmatprep.subr.mxu0 0.0
    %v265 = vand.u32 %v217, 4294901760
    %266 = vmatpush1.xpose.msra.mxu0 %v265
    %267 = vmatprep.subr.mxu0 0.0
    %v268 = vand.u32 %v220, 4294901760
    %269 = vmatpush1.xpose.msra.mxu0 %v268
    %270 = vmatprep.subr.mxu0 0.0
    %v271 = vand.u32 %v223, 4294901760
    %272 = vmatpush1.xpose.msra.mxu0 %v271
    %273 = vmatprep.subr.mxu0 0.0
    %v274 = vand.u32 %v226, 4294901760
    %275 = vmatpush1.xpose.msra.mxu0 %v274
    %276 = vmatprep.subr.mxu0 0.0
    %v277 = vand.u32 %v229, 4294901760
    %278 = vmatpush1.xpose.msra.mxu0 %v277
    %279 = vmatprep.subr.mxu0 0.0
    %v280 = vand.u32 %v232, 4294901760
    %281 = vmatpush1.xpose.msra.mxu0 %v280
    %282 = vmatprep.subr.mxu0 0.0
    %v283 = vand.u32 %v235, 4294901760
    %284 = vmatpush1.xpose.msra.mxu0 %v283
    %285 = vmatprep.subr.mxu0 0.0
    %v286 = vand.u32 %v238, 4294901760
    %287 = vmatpush1.xpose.msra.mxu0 %v286
    %288 = vmatprep.subr.mxu0 0.0
    %v289 = vand.u32 %v241, 4294901760
    %290 = vmatpush1.xpose.msra.mxu0 %v289
    %291 = vmatprep.subr.mxu0 0.0
    %v292 = vand.u32 %v244, 4294901760
    %293 = vmatpush1.xpose.msra.mxu0 %v292
    %294 = vmatprep.subr.mxu0 0.0
    %v295 = vand.u32 %v247, 4294901760
    %296 = vmatpush1.xpose.msra.mxu0 %v295
    %297 = vmatprep.subr.mxu0 0.0
    %v298 = vand.u32 %v250, 4294901760
    %299 = vmatpush1.xpose.msra.mxu0 %v298
    %300 = vmatprep.subr.mxu0 0.0
    %301 = vmatpush1.xpose.msra.mxu0 0.0
    %302 = vmatprep.subr.mxu0 0.0
    %303 = vmatpush1.xpose.msra.mxu0 0.0
    %304 = vmatprep.subr.mxu0 0.0
    %305 = vmatpush1.xpose.msra.mxu0 0.0
    %306 = vmatprep.subr.mxu0 0.0
    %307 = vmatpush1.xpose.msra.mxu0 0.0
    %308 = vmatprep.subr.mxu0 0.0
    %309 = vmatpush1.xpose.msra.mxu0 0.0
    %310 = vmatprep.subr.mxu0 0.0
    %311 = vmatpush1.xpose.msra.mxu0 0.0
    %312 = vmatprep.subr.mxu0 0.0
    %313 = vmatpush1.xpose.msra.mxu0 0.0
    %314 = vmatprep.subr.mxu0 0.0
    %315 = vmatpush1.xpose.msra.mxu0 0.0
    %316 = vmatprep.subr.mxu0 0.0
    %317 = vmatpush1.xpose.msra.mxu0 0.0
    %318 = vmatprep.subr.mxu0 0.0
    %319 = vmatpush1.xpose.msra.mxu0 0.0
    %320 = vmatprep.subr.mxu0 0.0
    %321 = vmatpush1.xpose.msra.mxu0 0.0
    %322 = vmatprep.subr.mxu0 0.0
    %323 = vmatpush1.xpose.msra.mxu0 0.0
    %324 = vmatprep.subr.mxu0 0.0
    %325 = vmatpush1.xpose.msra.mxu0 0.0
    %326 = vmatprep.subr.mxu0 0.0
    %327 = vmatpush1.xpose.msra.mxu0 0.0
    %328 = vmatprep.subr.mxu0 0.0
    %329 = vmatpush1.xpose.msra.mxu0 0.0
    %330 = vmatprep.subr.mxu0 0.0
    %331 = vmatpush1.xpose.msra.mxu0 0.0
    %332 = vmatprep.mubr.f32.mxu0 0.0
    %v333 = vand.u32 %v157, 4294901760
    %v334 = vsub.f32 %v157, %v333
    %v335 = vand.u32 %v334, 4294901760
    %v336 = vsub.f32 %v334, %v335
    %v337 = vand.u32 %v336, 4294901760
    %338 = vmatmul.mubr.f32.gmra.mrb[0].mxu0 %v337
    %v339 = vpop.f32.mrb[0].mxu0
    %v340 = vadd.f32 %v78, %v339
    %v341 = vpop.f32.mrb[0].mxu0
    %342 = vmatprep.mubr.f32.mxu0 0.0
    %v343 = vand.u32 %v160, 4294901760
    %v344 = vsub.f32 %v160, %v343
    %v345 = vand.u32 %v344, 4294901760
    %v346 = vsub.f32 %v344, %v345
    %v347 = vand.u32 %v346, 4294901760
    %348 = vmatmul.mubr.f32.gmra.mrb[0].mxu0 %v347
    %v349 = vpop.f32.mrb[0].mxu0
    %v350 = vadd.f32 %v83, %v349
    %v351 = vpop.f32.mrb[0].mxu0
    %352 = vmatprep.mubr.f32.mxu0 0.0
    %v353 = vand.u32 %v163, 4294901760
    %v354 = vsub.f32 %v163, %v353
    %v355 = vand.u32 %v354, 4294901760
    %v356 = vsub.f32 %v354, %v355
    %v357 = vand.u32 %v356, 4294901760
    %358 = vmatmul.mubr.f32.gmra.mrb[0].mxu0 %v357
    %v359 = vpop.f32.mrb[0].mxu0
    %v360 = vadd.f32 %v88, %v359
    %v361 = vpop.f32.mrb[0].mxu0
    %362 = vmatprep.mubr.f32.mxu0 0.0
    %v363 = vand.u32 %v166, 4294901760
    %v364 = vsub.f32 %v166, %v363
    %v365 = vand.u32 %v364, 4294901760
    %v366 = vsub.f32 %v364, %v365
    %v367 = vand.u32 %v366, 4294901760
    %368 = vmatmul.mubr.f32.gmra.mrb[0].mxu0 %v367
    %v369 = vpop.f32.mrb[0].mxu0
    %v370 = vadd.f32 %v93, %v369
    %v371 = vpop.f32.mrb[0].mxu0
    %372 = vmatprep.mubr.f32.mxu0 0.0
    %v373 = vand.u32 %v169, 4294901760
    %v374 = vsub.f32 %v169, %v373
    %v375 = vand.u32 %v374, 4294901760
    %v376 = vsub.f32 %v374, %v375
    %v377 = vand.u32 %v376, 4294901760
    %378 = vmatmul.mubr.f32.gmra.mrb[0].mxu0 %v377
    %v379 = vpop.f32.mrb[0].mxu0
    %v380 = vadd.f32 %v98, %v379
    %v381 = vpop.f32.mrb[0].mxu0
    %382 = vmatprep.mubr.f32.mxu0 0.0
    %v383 = vand.u32 %v172, 4294901760
    %v384 = vsub.f32 %v172, %v383
    %v385 = vand.u32 %v384, 4294901760
    %v386 = vsub.f32 %v384, %v385
    %v387 = vand.u32 %v386, 4294901760
    %388 = vmatmul.mubr.f32.gmra.mrb[0].mxu0 %v387
    %v389 = vpop.f32.mrb[0].mxu0
    %v390 = vadd.f32 %v103, %v389
    %v391 = vpop.f32.mrb[0].mxu0
    %392 = vmatprep.mubr.f32.mxu0 0.0
    %v393 = vand.u32 %v175, 4294901760
    %v394 = vsub.f32 %v175, %v393
    %v395 = vand.u32 %v394, 4294901760
    %v396 = vsub.f32 %v394, %v395
    %v397 = vand.u32 %v396, 4294901760
    %398 = vmatmul.mubr.f32.gmra.mrb[0].mxu0 %v397
    %v399 = vpop.f32.mrb[0].mxu0
    %v400 = vadd.f32 %v108, %v399
    %v401 = vpop.f32.mrb[0].mxu0
    %402 = vmatprep.mubr.f32.mxu0 0.0
    %v403 = vand.u32 %v178, 4294901760
    %v404 = vsub.f32 %v178, %v403
    %v405 = vand.u32 %v404, 4294901760
    %v406 = vsub.f32 %v404, %v405
    %v407 = vand.u32 %v406, 4294901760
    %408 = vmatmul.mubr.f32.gmra.mrb[0].mxu0 %v407
    %v409 = vpop.f32.mrb[0].mxu0
    %v410 = vadd.f32 %v113, %v409
    %v411 = vpop.f32.mrb[0].mxu0
    %412 = vmatprep.mubr.f32.mxu0 0.0
    %v413 = vand.u32 %v181, 4294901760
    %v414 = vsub.f32 %v181, %v413
    %v415 = vand.u32 %v414, 4294901760
    %v416 = vsub.f32 %v414, %v415
    %v417 = vand.u32 %v416, 4294901760
    %418 = vmatmul.mubr.f32.gmra.mrb[0].mxu0 %v417
    %v419 = vpop.f32.mrb[0].mxu0
    %v420 = vadd.f32 %v118, %v419
    %v421 = vpop.f32.mrb[0].mxu0
    %422 = vmatprep.mubr.f32.mxu0 0.0
    %v423 = vand.u32 %v184, 4294901760
    %v424 = vsub.f32 %v184, %v423
    %v425 = vand.u32 %v424, 4294901760
    %v426 = vsub.f32 %v424, %v425
    %v427 = vand.u32 %v426, 4294901760
    %428 = vmatmul.mubr.f32.gmra.mrb[0].mxu0 %v427
    %v429 = vpop.f32.mrb[0].mxu0
    %v430 = vadd.f32 %v123, %v429
    %v431 = vpop.f32.mrb[0].mxu0
    %432 = vmatprep.mubr.f32.mxu0 0.0
    %v433 = vand.u32 %v187, 4294901760
    %v434 = vsub.f32 %v187, %v433
    %v435 = vand.u32 %v434, 4294901760
    %v436 = vsub.f32 %v434, %v435
    %v437 = vand.u32 %v436, 4294901760
    %438 = vmatmul.mubr.f32.gmra.mrb[0].mxu0 %v437
    %v439 = vpop.f32.mrb[0].mxu0
    %v440 = vadd.f32 %v128, %v439
    %v441 = vpop.f32.mrb[0].mxu0
    %442 = vmatprep.mubr.f32.mxu0 0.0
    %v443 = vand.u32 %v190, 4294901760
    %v444 = vsub.f32 %v190, %v443
    %v445 = vand.u32 %v444, 4294901760
    %v446 = vsub.f32 %v444, %v445
    %v447 = vand.u32 %v446, 4294901760
    %448 = vmatmul.mubr.f32.gmra.mrb[0].mxu0 %v447
    %v449 = vpop.f32.mrb[0].mxu0
    %v450 = vadd.f32 %v133, %v449
    %v451 = vpop.f32.mrb[0].mxu0
    %452 = vmatprep.mubr.f32.mxu0 0.0
    %v453 = vand.u32 %v193, 4294901760
    %v454 = vsub.f32 %v193, %v453
    %v455 = vand.u32 %v454, 4294901760
    %v456 = vsub.f32 %v454, %v455
    %v457 = vand.u32 %v456, 4294901760
    %458 = vmatmul.mubr.f32.gmra.mrb[0].mxu0 %v457
    %v459 = vpop.f32.mrb[0].mxu0
    %v460 = vadd.f32 %v138, %v459
    %v461 = vpop.f32.mrb[0].mxu0
    %462 = vmatprep.mubr.f32.mxu0 0.0
    %v463 = vand.u32 %v196, 4294901760
    %v464 = vsub.f32 %v196, %v463
    %v465 = vand.u32 %v464, 4294901760
    %v466 = vsub.f32 %v464, %v465
    %v467 = vand.u32 %v466, 4294901760
    %468 = vmatmul.mubr.f32.gmra.mrb[0].mxu0 %v467
    %v469 = vpop.f32.mrb[0].mxu0
    %v470 = vadd.f32 %v143, %v469
    %v471 = vpop.f32.mrb[0].mxu0
    %472 = vmatprep.mubr.f32.mxu0 0.0
    %v473 = vand.u32 %v199, 4294901760
    %v474 = vsub.f32 %v199, %v473
    %v475 = vand.u32 %v474, 4294901760
    %v476 = vsub.f32 %v474, %v475
    %v477 = vand.u32 %v476, 4294901760
    %478 = vmatmul.mubr.f32.gmra.mrb[0].mxu0 %v477
    %v479 = vpop.f32.mrb[0].mxu0
    %v480 = vadd.f32 %v148, %v479
    %v481 = vpop.f32.mrb[0].mxu0
    %482 = vmatprep.mubr.f32.mxu0 0.0
    %v483 = vand.u32 %v202, 4294901760
    %v484 = vsub.f32 %v202, %v483
    %v485 = vand.u32 %v484, 4294901760
    %v486 = vsub.f32 %v484, %v485
    %v487 = vand.u32 %v486, 4294901760
    %488 = vmatmul.mubr.f32.gmra.mrb[0].mxu0 %v487
    %v489 = vpop.f32.mrb[0].mxu0
    %v490 = vadd.f32 %v153, %v489
    %v491 = vpop.f32.mrb[0].mxu0
    %492 = vdwg.mxu0
    %493 = vmatprep.subr.mxu0 0.0
    %v494 = vand.u32 %v205, 4294901760
    %v495 = vsub.f32 %v205, %v494
    %v496 = vand.u32 %v495, 4294901760
    %v497 = vsub.f32 %v495, %v496
    %v498 = vand.u32 %v497, 4294901760
    %499 = vmatpush1.xpose.msra.mxu0 %v498
    %500 = vmatprep.subr.mxu0 0.0
    %v501 = vand.u32 %v208, 4294901760
    %v502 = vsub.f32 %v208, %v501
    %v503 = vand.u32 %v502, 4294901760
    %v504 = vsub.f32 %v502, %v503
    %v505 = vand.u32 %v504, 4294901760
    %506 = vmatpush1.xpose.msra.mxu0 %v505
    %507 = vmatprep.subr.mxu0 0.0
    %v508 = vand.u32 %v211, 4294901760
    %v509 = vsub.f32 %v211, %v508
    %v510 = vand.u32 %v509, 4294901760
    %v511 = vsub.f32 %v509, %v510
    %v512 = vand.u32 %v511, 4294901760
    %513 = vmatpush1.xpose.msra.mxu0 %v512
    %514 = vmatprep.subr.mxu0 0.0
    %v515 = vand.u32 %v214, 4294901760
    %v516 = vsub.f32 %v214, %v515
    %v517 = vand.u32 %v516, 4294901760
    %v518 = vsub.f32 %v516, %v517
    %v519 = vand.u32 %v518, 4294901760
    %520 = vmatpush1.xpose.msra.mxu0 %v519
    %521 = vmatprep.subr.mxu0 0.0
    %v522 = vand.u32 %v217, 4294901760
    %v523 = vsub.f32 %v217, %v522
    %v524 = vand.u32 %v523, 4294901760
    %v525 = vsub.f32 %v523, %v524
    %v526 = vand.u32 %v525, 4294901760
    %527 = vmatpush1.xpose.msra.mxu0 %v526
    %528 = vmatprep.subr.mxu0 0.0
    %v529 = vand.u32 %v220, 4294901760
    %v530 = vsub.f32 %v220, %v529
    %v531 = vand.u32 %v530, 4294901760
    %v532 = vsub.f32 %v530, %v531
    %v533 = vand.u32 %v532, 4294901760
    %534 = vmatpush1.xpose.msra.mxu0 %v533
    %535 = vmatprep.subr.mxu0 0.0
    %v536 = vand.u32 %v223, 4294901760
    %v537 = vsub.f32 %v223, %v536
    %v538 = vand.u32 %v537, 4294901760
    %v539 = vsub.f32 %v537, %v538
    %v540 = vand.u32 %v539, 4294901760
    %541 = vmatpush1.xpose.msra.mxu0 %v540
    %542 = vmatprep.subr.mxu0 0.0
    %v543 = vand.u32 %v226, 4294901760
    %v544 = vsub.f32 %v226, %v543
    %v545 = vand.u32 %v544, 4294901760
    %v546 = vsub.f32 %v544, %v545
    %v547 = vand.u32 %v546, 4294901760
    %548 = vmatpush1.xpose.msra.mxu0 %v547
    %549 = vmatprep.subr.mxu0 0.0
    %v550 = vand.u32 %v229, 4294901760
    %v551 = vsub.f32 %v229, %v550
    %v552 = vand.u32 %v551, 4294901760
    %v553 = vsub.f32 %v551, %v552
    %v554 = vand.u32 %v553, 4294901760
    %555 = vmatpush1.xpose.msra.mxu0 %v554
    %556 = vmatprep.subr.mxu0 0.0
    %v557 = vand.u32 %v232, 4294901760
    %v558 = vsub.f32 %v232, %v557
    %v559 = vand.u32 %v558, 4294901760
    %v560 = vsub.f32 %v558, %v559
    %v561 = vand.u32 %v560, 4294901760
    %562 = vmatpush1.xpose.msra.mxu0 %v561
    %563 = vmatprep.subr.mxu0 0.0
    %v564 = vand.u32 %v235, 4294901760
    %v565 = vsub.f32 %v235, %v564
    %v566 = vand.u32 %v565, 4294901760
    %v567 = vsub.f32 %v565, %v566
    %v568 = vand.u32 %v567, 4294901760
    %569 = vmatpush1.xpose.msra.mxu0 %v568
    %570 = vmatprep.subr.mxu0 0.0
    %v571 = vand.u32 %v238, 4294901760
    %v572 = vsub.f32 %v238, %v571
    %v573 = vand.u32 %v572, 4294901760
    %v574 = vsub.f32 %v572, %v573
    %v575 = vand.u32 %v574, 4294901760
    %576 = vmatpush1.xpose.msra.mxu0 %v575
    %577 = vmatprep.subr.mxu0 0.0
    %v578 = vand.u32 %v241, 4294901760
    %v579 = vsub.f32 %v241, %v578
    %v580 = vand.u32 %v579, 4294901760
    %v581 = vsub.f32 %v579, %v580
    %v582 = vand.u32 %v581, 4294901760
    %583 = vmatpush1.xpose.msra.mxu0 %v582
    %584 = vmatprep.subr.mxu0 0.0
    %v585 = vand.u32 %v244, 4294901760
    %v586 = vsub.f32 %v244, %v585
    %v587 = vand.u32 %v586, 4294901760
    %v588 = vsub.f32 %v586, %v587
    %v589 = vand.u32 %v588, 4294901760
    %590 = vmatpush1.xpose.msra.mxu0 %v589
    %591 = vmatprep.subr.mxu0 0.0
    %v592 = vand.u32 %v247, 4294901760
    %v593 = vsub.f32 %v247, %v592
    %v594 = vand.u32 %v593, 4294901760
    %v595 = vsub.f32 %v593, %v594
    %v596 = vand.u32 %v595, 4294901760
    %597 = vmatpush1.xpose.msra.mxu0 %v596
    %598 = vmatprep.subr.mxu0 0.0
    %v599 = vand.u32 %v250, 4294901760
    %v600 = vsub.f32 %v250, %v599
    %v601 = vand.u32 %v600, 4294901760
    %v602 = vsub.f32 %v600, %v601
    %v603 = vand.u32 %v602, 4294901760
    %604 = vmatpush1.xpose.msra.mxu0 %v603
    %605 = vmatprep.subr.mxu0 0.0
    %606 = vmatpush1.xpose.msra.mxu0 0.0
    %607 = vmatprep.subr.mxu0 0.0
    %608 = vmatpush1.xpose.msra.mxu0 0.0
    %609 = vmatprep.subr.mxu0 0.0
    %610 = vmatpush1.xpose.msra.mxu0 0.0
    %611 = vmatprep.subr.mxu0 0.0
    %612 = vmatpush1.xpose.msra.mxu0 0.0
    %613 = vmatprep.subr.mxu0 0.0
    %614 = vmatpush1.xpose.msra.mxu0 0.0
    %615 = vmatprep.subr.mxu0 0.0
    %616 = vmatpush1.xpose.msra.mxu0 0.0
    %617 = vmatprep.subr.mxu0 0.0
    %618 = vmatpush1.xpose.msra.mxu0 0.0
    %619 = vmatprep.subr.mxu0 0.0
    %620 = vmatpush1.xpose.msra.mxu0 0.0
    %621 = vmatprep.subr.mxu0 0.0
    %622 = vmatpush1.xpose.msra.mxu0 0.0
    %623 = vmatprep.subr.mxu0 0.0
    %624 = vmatpush1.xpose.msra.mxu0 0.0
    %625 = vmatprep.subr.mxu0 0.0
    %626 = vmatpush1.xpose.msra.mxu0 0.0
    %627 = vmatprep.subr.mxu0 0.0
    %628 = vmatpush1.xpose.msra.mxu0 0.0
    %629 = vmatprep.subr.mxu0 0.0
    %630 = vmatpush1.xpose.msra.mxu0 0.0
    %631 = vmatprep.subr.mxu0 0.0
    %632 = vmatpush1.xpose.msra.mxu0 0.0
    %633 = vmatprep.subr.mxu0 0.0
    %634 = vmatpush1.xpose.msra.mxu0 0.0
    %635 = vmatprep.subr.mxu0 0.0
    %636 = vmatpush1.xpose.msra.mxu0 0.0
    %637 = vmatprep.mubr.f32.mxu0 0.0
    %v638 = vand.u32 %v157, 4294901760
    %639 = vmatmul.mubr.f32.gmra.mrb[0].mxu0 %v638
    %v640 = vpop.f32.mrb[0].mxu0
    %v641 = vadd.f32 %v340, %v640
    %v642 = vpop.f32.mrb[0].mxu0
    %643 = vmatprep.mubr.f32.mxu0 0.0
    %v644 = vand.u32 %v160, 4294901760
    %645 = vmatmul.mubr.f32.gmra.mrb[0].mxu0 %v644
    %v646 = vpop.f32.mrb[0].mxu0
    %v647 = vadd.f32 %v350, %v646
    %v648 = vpop.f32.mrb[0].mxu0
    %649 = vmatprep.mubr.f32.mxu0 0.0
    %v650 = vand.u32 %v163, 4294901760
    %651 = vmatmul.mubr.f32.gmra.mrb[0].mxu0 %v650
    %v652 = vpop.f32.mrb[0].mxu0
    %v653 = vadd.f32 %v360, %v652
    %v654 = vpop.f32.mrb[0].mxu0
    %655 = vmatprep.mubr.f32.mxu0 0.0
    %v656 = vand.u32 %v166, 4294901760
    %657 = vmatmul.mubr.f32.gmra.mrb[0].mxu0 %v656
    %v658 = vpop.f32.mrb[0].mxu0
    %v659 = vadd.f32 %v370, %v658
    %v660 = vpop.f32.mrb[0].mxu0
    %661 = vmatprep.mubr.f32.mxu0 0.0
    %v662 = vand.u32 %v169, 4294901760
    %663 = vmatmul.mubr.f32.gmra.mrb[0].mxu0 %v662
    %v664 = vpop.f32.mrb[0].mxu0
    %v665 = vadd.f32 %v380, %v664
    %v666 = vpop.f32.mrb[0].mxu0
    %667 = vmatprep.mubr.f32.mxu0 0.0
    %v668 = vand.u32 %v172, 4294901760
    %669 = vmatmul.mubr.f32.gmra.mrb[0].mxu0 %v668
    %v670 = vpop.f32.mrb[0].mxu0
    %v671 = vadd.f32 %v390, %v670
    %v672 = vpop.f32.mrb[0].mxu0
    %673 = vmatprep.mubr.f32.mxu0 0.0
    %v674 = vand.u32 %v175, 4294901760
    %675 = vmatmul.mubr.f32.gmra.mrb[0].mxu0 %v674
    %v676 = vpop.f32.mrb[0].mxu0
    %v677 = vadd.f32 %v400, %v676
    %v678 = vpop.f32.mrb[0].mxu0
    %679 = vmatprep.mubr.f32.mxu0 0.0
    %v680 = vand.u32 %v178, 4294901760
    %681 = vmatmul.mubr.f32.gmra.mrb[0].mxu0 %v680
    %v682 = vpop.f32.mrb[0].mxu0
    %v683 = vadd.f32 %v410, %v682
    %v684 = vpop.f32.mrb[0].mxu0
    %685 = vmatprep.mubr.f32.mxu0 0.0
    %v686 = vand.u32 %v181, 4294901760
    %687 = vmatmul.mubr.f32.gmra.mrb[0].mxu0 %v686
    %v688 = vpop.f32.mrb[0].mxu0
    %v689 = vadd.f32 %v420, %v688
    %v690 = vpop.f32.mrb[0].mxu0
    %691 = vmatprep.mubr.f32.mxu0 0.0
    %v692 = vand.u32 %v184, 4294901760
    %693 = vmatmul.mubr.f32.gmra.mrb[0].mxu0 %v692
    %v694 = vpop.f32.mrb[0].mxu0
    %v695 = vadd.f32 %v430, %v694
    %v696 = vpop.f32.mrb[0].mxu0
    %697 = vmatprep.mubr.f32.mxu0 0.0
    %v698 = vand.u32 %v187, 4294901760
    %699 = vmatmul.mubr.f32.gmra.mrb[0].mxu0 %v698
    %v700 = vpop.f32.mrb[0].mxu0
    %v701 = vadd.f32 %v440, %v700
    %v702 = vpop.f32.mrb[0].mxu0
    %703 = vmatprep.mubr.f32.mxu0 0.0
    %v704 = vand.u32 %v190, 4294901760
    %705 = vmatmul.mubr.f32.gmra.mrb[0].mxu0 %v704
    %v706 = vpop.f32.mrb[0].mxu0
    %v707 = vadd.f32 %v450, %v706
    %v708 = vpop.f32.mrb[0].mxu0
    %709 = vmatprep.mubr.f32.mxu0 0.0
    %v710 = vand.u32 %v193, 4294901760
    %711 = vmatmul.mubr.f32.gmra.mrb[0].mxu0 %v710
    %v712 = vpop.f32.mrb[0].mxu0
    %v713 = vadd.f32 %v460, %v712
    %v714 = vpop.f32.mrb[0].mxu0
    %715 = vmatprep.mubr.f32.mxu0 0.0
    %v716 = vand.u32 %v196, 4294901760
    %717 = vmatmul.mubr.f32.gmra.mrb[0].mxu0 %v716
    %v718 = vpop.f32.mrb[0].mxu0
    %v719 = vadd.f32 %v470, %v718
    %v720 = vpop.f32.mrb[0].mxu0
    %721 = vmatprep.mubr.f32.mxu0 0.0
    %v722 = vand.u32 %v199, 4294901760
    %723 = vmatmul.mubr.f32.gmra.mrb[0].mxu0 %v722
    %v724 = vpop.f32.mrb[0].mxu0
    %v725 = vadd.f32 %v480, %v724
    %v726 = vpop.f32.mrb[0].mxu0
    %727 = vmatprep.mubr.f32.mxu0 0.0
    %v728 = vand.u32 %v202, 4294901760
    %729 = vmatmul.mubr.f32.gmra.mrb[0].mxu0 %v728
    %v730 = vpop.f32.mrb[0].mxu0
    %v731 = vadd.f32 %v490, %v730
    %v732 = vpop.f32.mrb[0].mxu0
    %733 = vdwg.mxu0
    %734 = vmatprep.subr.mxu0 0.0
    %v735 = vand.u32 %v205, 4294901760
    %v736 = vsub.f32 %v205, %v735
    %737 = vmatpush1.xpose.msra.mxu0 %v736
    %738 = vmatprep.subr.mxu0 0.0
    %v739 = vand.u32 %v208, 4294901760
    %v740 = vsub.f32 %v208, %v739
    %741 = vmatpush1.xpose.msra.mxu0 %v740
    %742 = vmatprep.subr.mxu0 0.0
    %v743 = vand.u32 %v211, 4294901760
    %v744 = vsub.f32 %v211, %v743
    %745 = vmatpush1.xpose.msra.mxu0 %v744
    %746 = vmatprep.subr.mxu0 0.0
    %v747 = vand.u32 %v214, 4294901760
    %v748 = vsub.f32 %v214, %v747
    %749 = vmatpush1.xpose.msra.mxu0 %v748
    %750 = vmatprep.subr.mxu0 0.0
    %v751 = vand.u32 %v217, 4294901760
    %v752 = vsub.f32 %v217, %v751
    %753 = vmatpush1.xpose.msra.mxu0 %v752
    %754 = vmatprep.subr.mxu0 0.0
    %v755 = vand.u32 %v220, 4294901760
    %v756 = vsub.f32 %v220, %v755
    %757 = vmatpush1.xpose.msra.mxu0 %v756
    %758 = vmatprep.subr.mxu0 0.0
    %v759 = vand.u32 %v223, 4294901760
    %v760 = vsub.f32 %v223, %v759
    %761 = vmatpush1.xpose.msra.mxu0 %v760
    %762 = vmatprep.subr.mxu0 0.0
    %v763 = vand.u32 %v226, 4294901760
    %v764 = vsub.f32 %v226, %v763
    %765 = vmatpush1.xpose.msra.mxu0 %v764
    %766 = vmatprep.subr.mxu0 0.0
    %v767 = vand.u32 %v229, 4294901760
    %v768 = vsub.f32 %v229, %v767
    %769 = vmatpush1.xpose.msra.mxu0 %v768
    %770 = vmatprep.subr.mxu0 0.0
    %v771 = vand.u32 %v232, 4294901760
    %v772 = vsub.f32 %v232, %v771
    %773 = vmatpush1.xpose.msra.mxu0 %v772
    %774 = vmatprep.subr.mxu0 0.0
    %v775 = vand.u32 %v235, 4294901760
    %v776 = vsub.f32 %v235, %v775
    %777 = vmatpush1.xpose.msra.mxu0 %v776
    %778 = vmatprep.subr.mxu0 0.0
    %v779 = vand.u32 %v238, 4294901760
    %v780 = vsub.f32 %v238, %v779
    %781 = vmatpush1.xpose.msra.mxu0 %v780
    %782 = vmatprep.subr.mxu0 0.0
    %v783 = vand.u32 %v241, 4294901760
    %v784 = vsub.f32 %v241, %v783
    %785 = vmatpush1.xpose.msra.mxu0 %v784
    %786 = vmatprep.subr.mxu0 0.0
    %v787 = vand.u32 %v244, 4294901760
    %v788 = vsub.f32 %v244, %v787
    %789 = vmatpush1.xpose.msra.mxu0 %v788
    %790 = vmatprep.subr.mxu0 0.0
    %v791 = vand.u32 %v247, 4294901760
    %v792 = vsub.f32 %v247, %v791
    %793 = vmatpush1.xpose.msra.mxu0 %v792
    %794 = vmatprep.subr.mxu0 0.0
    %v795 = vand.u32 %v250, 4294901760
    %v796 = vsub.f32 %v250, %v795
    %797 = vmatpush1.xpose.msra.mxu0 %v796
    %798 = vmatprep.subr.mxu0 0.0
    %799 = vmatpush1.xpose.msra.mxu0 0.0
    %800 = vmatprep.subr.mxu0 0.0
    %801 = vmatpush1.xpose.msra.mxu0 0.0
    %802 = vmatprep.subr.mxu0 0.0
    %803 = vmatpush1.xpose.msra.mxu0 0.0
    %804 = vmatprep.subr.mxu0 0.0
    %805 = vmatpush1.xpose.msra.mxu0 0.0
    %806 = vmatprep.subr.mxu0 0.0
    %807 = vmatpush1.xpose.msra.mxu0 0.0
    %808 = vmatprep.subr.mxu0 0.0
    %809 = vmatpush1.xpose.msra.mxu0 0.0
    %810 = vmatprep.subr.mxu0 0.0
    %811 = vmatpush1.xpose.msra.mxu0 0.0
    %812 = vmatprep.subr.mxu0 0.0
    %813 = vmatpush1.xpose.msra.mxu0 0.0
    %814 = vmatprep.subr.mxu0 0.0
    %815 = vmatpush1.xpose.msra.mxu0 0.0
    %816 = vmatprep.subr.mxu0 0.0
    %817 = vmatpush1.xpose.msra.mxu0 0.0
    %818 = vmatprep.subr.mxu0 0.0
    %819 = vmatpush1.xpose.msra.mxu0 0.0
    %820 = vmatprep.subr.mxu0 0.0
    %821 = vmatpush1.xpose.msra.mxu0 0.0
    %822 = vmatprep.subr.mxu0 0.0
    %823 = vmatpush1.xpose.msra.mxu0 0.0
    %824 = vmatprep.subr.mxu0 0.0
    %825 = vmatpush1.xpose.msra.mxu0 0.0
    %826 = vmatprep.subr.mxu0 0.0
    %827 = vmatpush1.xpose.msra.mxu0 0.0
    %828 = vmatprep.subr.mxu0 0.0
    %829 = vmatpush1.xpose.msra.mxu0 0.0
    %830 = vmatprep.mubr.f32.mxu0 0.0
    %v831 = vand.u32 %v157, 4294901760
    %v832 = vsub.f32 %v157, %v831
    %833 = vmatmul.mubr.f32.gmra.mrb[0].mxu0 %v832
    %v834 = vpop.f32.mrb[0].mxu0
    %v835 = vadd.f32 %v641, %v834
    %v836 = vpop.f32.mrb[0].mxu0
    %837 = vmatprep.mubr.f32.mxu0 0.0
    %v838 = vand.u32 %v160, 4294901760
    %v839 = vsub.f32 %v160, %v838
    %840 = vmatmul.mubr.f32.gmra.mrb[0].mxu0 %v839
    %v841 = vpop.f32.mrb[0].mxu0
    %v842 = vadd.f32 %v647, %v841
    %v843 = vpop.f32.mrb[0].mxu0
    %844 = vmatprep.mubr.f32.mxu0 0.0
    %v845 = vand.u32 %v163, 4294901760
    %v846 = vsub.f32 %v163, %v845
    %847 = vmatmul.mubr.f32.gmra.mrb[0].mxu0 %v846
    %v848 = vpop.f32.mrb[0].mxu0
    %v849 = vadd.f32 %v653, %v848
    %v850 = vpop.f32.mrb[0].mxu0
    %851 = vmatprep.mubr.f32.mxu0 0.0
    %v852 = vand.u32 %v166, 4294901760
    %v853 = vsub.f32 %v166, %v852
    %854 = vmatmul.mubr.f32.gmra.mrb[0].mxu0 %v853
    %v855 = vpop.f32.mrb[0].mxu0
    %v856 = vadd.f32 %v659, %v855
    %v857 = vpop.f32.mrb[0].mxu0
    %858 = vmatprep.mubr.f32.mxu0 0.0
    %v859 = vand.u32 %v169, 4294901760
    %v860 = vsub.f32 %v169, %v859
    %861 = vmatmul.mubr.f32.gmra.mrb[0].mxu0 %v860
    %v862 = vpop.f32.mrb[0].mxu0
    %v863 = vadd.f32 %v665, %v862
    %v864 = vpop.f32.mrb[0].mxu0
    %865 = vmatprep.mubr.f32.mxu0 0.0
    %v866 = vand.u32 %v172, 4294901760
    %v867 = vsub.f32 %v172, %v866
    %868 = vmatmul.mubr.f32.gmra.mrb[0].mxu0 %v867
    %v869 = vpop.f32.mrb[0].mxu0
    %v870 = vadd.f32 %v671, %v869
    %v871 = vpop.f32.mrb[0].mxu0
    %872 = vmatprep.mubr.f32.mxu0 0.0
    %v873 = vand.u32 %v175, 4294901760
    %v874 = vsub.f32 %v175, %v873
    %875 = vmatmul.mubr.f32.gmra.mrb[0].mxu0 %v874
    %v876 = vpop.f32.mrb[0].mxu0
    %v877 = vadd.f32 %v677, %v876
    %v878 = vpop.f32.mrb[0].mxu0
    %879 = vmatprep.mubr.f32.mxu0 0.0
    %v880 = vand.u32 %v178, 4294901760
    %v881 = vsub.f32 %v178, %v880
    %882 = vmatmul.mubr.f32.gmra.mrb[0].mxu0 %v881
    %v883 = vpop.f32.mrb[0].mxu0
    %v884 = vadd.f32 %v683, %v883
    %v885 = vpop.f32.mrb[0].mxu0
    %886 = vmatprep.mubr.f32.mxu0 0.0
    %v887 = vand.u32 %v181, 4294901760
    %v888 = vsub.f32 %v181, %v887
    %889 = vmatmul.mubr.f32.gmra.mrb[0].mxu0 %v888
    %v890 = vpop.f32.mrb[0].mxu0
    %v891 = vadd.f32 %v689, %v890
    %v892 = vpop.f32.mrb[0].mxu0
    %893 = vmatprep.mubr.f32.mxu0 0.0
    %v894 = vand.u32 %v184, 4294901760
    %v895 = vsub.f32 %v184, %v894
    %896 = vmatmul.mubr.f32.gmra.mrb[0].mxu0 %v895
    %v897 = vpop.f32.mrb[0].mxu0
    %v898 = vadd.f32 %v695, %v897
    %v899 = vpop.f32.mrb[0].mxu0
    %900 = vmatprep.mubr.f32.mxu0 0.0
    %v901 = vand.u32 %v187, 4294901760
    %v902 = vsub.f32 %v187, %v901
    %903 = vmatmul.mubr.f32.gmra.mrb[0].mxu0 %v902
    %v904 = vpop.f32.mrb[0].mxu0
    %v905 = vadd.f32 %v701, %v904
    %v906 = vpop.f32.mrb[0].mxu0
    %907 = vmatprep.mubr.f32.mxu0 0.0
    %v908 = vand.u32 %v190, 4294901760
    %v909 = vsub.f32 %v190, %v908
    %910 = vmatmul.mubr.f32.gmra.mrb[0].mxu0 %v909
    %v911 = vpop.f32.mrb[0].mxu0
    %v912 = vadd.f32 %v707, %v911
    %v913 = vpop.f32.mrb[0].mxu0
    %914 = vmatprep.mubr.f32.mxu0 0.0
    %v915 = vand.u32 %v193, 4294901760
    %v916 = vsub.f32 %v193, %v915
    %917 = vmatmul.mubr.f32.gmra.mrb[0].mxu0 %v916
    %v918 = vpop.f32.mrb[0].mxu0
    %v919 = vadd.f32 %v713, %v918
    %v920 = vpop.f32.mrb[0].mxu0
    %921 = vmatprep.mubr.f32.mxu0 0.0
    %v922 = vand.u32 %v196, 4294901760
    %v923 = vsub.f32 %v196, %v922
    %924 = vmatmul.mubr.f32.gmra.mrb[0].mxu0 %v923
    %v925 = vpop.f32.mrb[0].mxu0
    %v926 = vadd.f32 %v719, %v925
    %v927 = vpop.f32.mrb[0].mxu0
    %928 = vmatprep.mubr.f32.mxu0 0.0
    %v929 = vand.u32 %v199, 4294901760
    %v930 = vsub.f32 %v199, %v929
    %931 = vmatmul.mubr.f32.gmra.mrb[0].mxu0 %v930
    %v932 = vpop.f32.mrb[0].mxu0
    %v933 = vadd.f32 %v725, %v932
    %v934 = vpop.f32.mrb[0].mxu0
    %935 = vmatprep.mubr.f32.mxu0 0.0
    %v936 = vand.u32 %v202, 4294901760
    %v937 = vsub.f32 %v202, %v936
    %938 = vmatmul.mubr.f32.gmra.mrb[0].mxu0 %v937
    %v939 = vpop.f32.mrb[0].mxu0
    %v940 = vadd.f32 %v731, %v939
    %v941 = vpop.f32.mrb[0].mxu0
    %942 = vdwg.mxu0
    %943 = vmatprep.subr.mxu0 0.0
    %v944 = vand.u32 %v205, 4294901760
    %945 = vmatpush1.xpose.msra.mxu0 %v944
    %946 = vmatprep.subr.mxu0 0.0
    %v947 = vand.u32 %v208, 4294901760
    %948 = vmatpush1.xpose.msra.mxu0 %v947
    %949 = vmatprep.subr.mxu0 0.0
    %v950 = vand.u32 %v211, 4294901760
    %951 = vmatpush1.xpose.msra.mxu0 %v950
    %952 = vmatprep.subr.mxu0 0.0
    %v953 = vand.u32 %v214, 4294901760
    %954 = vmatpush1.xpose.msra.mxu0 %v953
    %955 = vmatprep.subr.mxu0 0.0
    %v956 = vand.u32 %v217, 4294901760
    %957 = vmatpush1.xpose.msra.mxu0 %v956
    %958 = vmatprep.subr.mxu0 0.0
    %v959 = vand.u32 %v220, 4294901760
    %960 = vmatpush1.xpose.msra.mxu0 %v959
    %961 = vmatprep.subr.mxu0 0.0
    %v962 = vand.u32 %v223, 4294901760
    %963 = vmatpush1.xpose.msra.mxu0 %v962
    %964 = vmatprep.subr.mxu0 0.0
    %v965 = vand.u32 %v226, 4294901760
    %966 = vmatpush1.xpose.msra.mxu0 %v965
    %967 = vmatprep.subr.mxu0 0.0
    %v968 = vand.u32 %v229, 4294901760
    %969 = vmatpush1.xpose.msra.mxu0 %v968
    %970 = vmatprep.subr.mxu0 0.0
    %v971 = vand.u32 %v232, 4294901760
    %972 = vmatpush1.xpose.msra.mxu0 %v971
    %973 = vmatprep.subr.mxu0 0.0
    %v974 = vand.u32 %v235, 4294901760
    %975 = vmatpush1.xpose.msra.mxu0 %v974
    %976 = vmatprep.subr.mxu0 0.0
    %v977 = vand.u32 %v238, 4294901760
    %978 = vmatpush1.xpose.msra.mxu0 %v977
    %979 = vmatprep.subr.mxu0 0.0
    %v980 = vand.u32 %v241, 4294901760
    %981 = vmatpush1.xpose.msra.mxu0 %v980
    %982 = vmatprep.subr.mxu0 0.0
    %v983 = vand.u32 %v244, 4294901760
    %984 = vmatpush1.xpose.msra.mxu0 %v983
    %985 = vmatprep.subr.mxu0 0.0
    %v986 = vand.u32 %v247, 4294901760
    %987 = vmatpush1.xpose.msra.mxu0 %v986
    %988 = vmatprep.subr.mxu0 0.0
    %v989 = vand.u32 %v250, 4294901760
    %990 = vmatpush1.xpose.msra.mxu0 %v989
    %991 = vmatprep.subr.mxu0 0.0
    %992 = vmatpush1.xpose.msra.mxu0 0.0
    %993 = vmatprep.subr.mxu0 0.0
    %994 = vmatpush1.xpose.msra.mxu0 0.0
    %995 = vmatprep.subr.mxu0 0.0
    %996 = vmatpush1.xpose.msra.mxu0 0.0
    %997 = vmatprep.subr.mxu0 0.0
    %998 = vmatpush1.xpose.msra.mxu0 0.0
    %999 = vmatprep.subr.mxu0 0.0
    %1000 = vmatpush1.xpose.msra.mxu0 0.0
    %1001 = vmatprep.subr.mxu0 0.0
    %1002 = vmatpush1.xpose.msra.mxu0 0.0
    %1003 = vmatprep.subr.mxu0 0.0
    %1004 = vmatpush1.xpose.msra.mxu0 0.0
    %1005 = vmatprep.subr.mxu0 0.0
    %1006 = vmatpush1.xpose.msra.mxu0 0.0
    %1007 = vmatprep.subr.mxu0 0.0
    %1008 = vmatpush1.xpose.msra.mxu0 0.0
    %1009 = vmatprep.subr.mxu0 0.0
    %1010 = vmatpush1.xpose.msra.mxu0 0.0
    %1011 = vmatprep.subr.mxu0 0.0
    %1012 = vmatpush1.xpose.msra.mxu0 0.0
    %1013 = vmatprep.subr.mxu0 0.0
    %1014 = vmatpush1.xpose.msra.mxu0 0.0
    %1015 = vmatprep.subr.mxu0 0.0
    %1016 = vmatpush1.xpose.msra.mxu0 0.0
    %1017 = vmatprep.subr.mxu0 0.0
    %1018 = vmatpush1.xpose.msra.mxu0 0.0
    %1019 = vmatprep.subr.mxu0 0.0
    %1020 = vmatpush1.xpose.msra.mxu0 0.0
    %1021 = vmatprep.subr.mxu0 0.0
    %1022 = vmatpush1.xpose.msra.mxu0 0.0
    %1023 = vmatprep.mubr.f32.mxu0 0.0
    %v1024 = vand.u32 %v157, 4294901760
    %v1025 = vsub.f32 %v157, %v1024
    %v1026 = vand.u32 %v1025, 4294901760
    %1027 = vmatmul.mubr.f32.gmra.mrb[0].mxu0 %v1026
    %v1028 = vpop.f32.mrb[0].mxu0
    %v1029 = vadd.f32 %v835, %v1028
    %v1030 = vpop.f32.mrb[0].mxu0
    %1031 = vmatprep.mubr.f32.mxu0 0.0
    %v1032 = vand.u32 %v160, 4294901760
    %v1033 = vsub.f32 %v160, %v1032
    %v1034 = vand.u32 %v1033, 4294901760
    %1035 = vmatmul.mubr.f32.gmra.mrb[0].mxu0 %v1034
    %v1036 = vpop.f32.mrb[0].mxu0
    %v1037 = vadd.f32 %v842, %v1036
    %v1038 = vpop.f32.mrb[0].mxu0
    %1039 = vmatprep.mubr.f32.mxu0 0.0
    %v1040 = vand.u32 %v163, 4294901760
    %v1041 = vsub.f32 %v163, %v1040
    %v1042 = vand.u32 %v1041, 4294901760
    %1043 = vmatmul.mubr.f32.gmra.mrb[0].mxu0 %v1042
    %v1044 = vpop.f32.mrb[0].mxu0
    %v1045 = vadd.f32 %v849, %v1044
    %v1046 = vpop.f32.mrb[0].mxu0
    %1047 = vmatprep.mubr.f32.mxu0 0.0
    %v1048 = vand.u32 %v166, 4294901760
    %v1049 = vsub.f32 %v166, %v1048
    %v1050 = vand.u32 %v1049, 4294901760
    %1051 = vmatmul.mubr.f32.gmra.mrb[0].mxu0 %v1050
    %v1052 = vpop.f32.mrb[0].mxu0
    %v1053 = vadd.f32 %v856, %v1052
    %v1054 = vpop.f32.mrb[0].mxu0
    %1055 = vmatprep.mubr.f32.mxu0 0.0
    %v1056 = vand.u32 %v169, 4294901760
    %v1057 = vsub.f32 %v169, %v1056
    %v1058 = vand.u32 %v1057, 4294901760
    %1059 = vmatmul.mubr.f32.gmra.mrb[0].mxu0 %v1058
    %v1060 = vpop.f32.mrb[0].mxu0
    %v1061 = vadd.f32 %v863, %v1060
    %v1062 = vpop.f32.mrb[0].mxu0
    %1063 = vmatprep.mubr.f32.mxu0 0.0
    %v1064 = vand.u32 %v172, 4294901760
    %v1065 = vsub.f32 %v172, %v1064
    %v1066 = vand.u32 %v1065, 4294901760
    %1067 = vmatmul.mubr.f32.gmra.mrb[0].mxu0 %v1066
    %v1068 = vpop.f32.mrb[0].mxu0
    %v1069 = vadd.f32 %v870, %v1068
    %v1070 = vpop.f32.mrb[0].mxu0
    %1071 = vmatprep.mubr.f32.mxu0 0.0
    %v1072 = vand.u32 %v175, 4294901760
    %v1073 = vsub.f32 %v175, %v1072
    %v1074 = vand.u32 %v1073, 4294901760
    %1075 = vmatmul.mubr.f32.gmra.mrb[0].mxu0 %v1074
    %v1076 = vpop.f32.mrb[0].mxu0
    %v1077 = vadd.f32 %v877, %v1076
    %v1078 = vpop.f32.mrb[0].mxu0
    %1079 = vmatprep.mubr.f32.mxu0 0.0
    %v1080 = vand.u32 %v178, 4294901760
    %v1081 = vsub.f32 %v178, %v1080
    %v1082 = vand.u32 %v1081, 4294901760
    %1083 = vmatmul.mubr.f32.gmra.mrb[0].mxu0 %v1082
    %v1084 = vpop.f32.mrb[0].mxu0
    %v1085 = vadd.f32 %v884, %v1084
    %v1086 = vpop.f32.mrb[0].mxu0
    %1087 = vmatprep.mubr.f32.mxu0 0.0
    %v1088 = vand.u32 %v181, 4294901760
    %v1089 = vsub.f32 %v181, %v1088
    %v1090 = vand.u32 %v1089, 4294901760
    %1091 = vmatmul.mubr.f32.gmra.mrb[0].mxu0 %v1090
    %v1092 = vpop.f32.mrb[0].mxu0
    %v1093 = vadd.f32 %v891, %v1092
    %v1094 = vpop.f32.mrb[0].mxu0
    %1095 = vmatprep.mubr.f32.mxu0 0.0
    %v1096 = vand.u32 %v184, 4294901760
    %v1097 = vsub.f32 %v184, %v1096
    %v1098 = vand.u32 %v1097, 4294901760
    %1099 = vmatmul.mubr.f32.gmra.mrb[0].mxu0 %v1098
    %v1100 = vpop.f32.mrb[0].mxu0
    %v1101 = vadd.f32 %v898, %v1100
    %v1102 = vpop.f32.mrb[0].mxu0
    %1103 = vmatprep.mubr.f32.mxu0 0.0
    %v1104 = vand.u32 %v187, 4294901760
    %v1105 = vsub.f32 %v187, %v1104
    %v1106 = vand.u32 %v1105, 4294901760
    %1107 = vmatmul.mubr.f32.gmra.mrb[0].mxu0 %v1106
    %v1108 = vpop.f32.mrb[0].mxu0
    %v1109 = vadd.f32 %v905, %v1108
    %v1110 = vpop.f32.mrb[0].mxu0
    %1111 = vmatprep.mubr.f32.mxu0 0.0
    %v1112 = vand.u32 %v190, 4294901760
    %v1113 = vsub.f32 %v190, %v1112
    %v1114 = vand.u32 %v1113, 4294901760
    %1115 = vmatmul.mubr.f32.gmra.mrb[0].mxu0 %v1114
    %v1116 = vpop.f32.mrb[0].mxu0
    %v1117 = vadd.f32 %v912, %v1116
    %v1118 = vpop.f32.mrb[0].mxu0
    %1119 = vmatprep.mubr.f32.mxu0 0.0
    %v1120 = vand.u32 %v193, 4294901760
    %v1121 = vsub.f32 %v193, %v1120
    %v1122 = vand.u32 %v1121, 4294901760
    %1123 = vmatmul.mubr.f32.gmra.mrb[0].mxu0 %v1122
    %v1124 = vpop.f32.mrb[0].mxu0
    %v1125 = vadd.f32 %v919, %v1124
    %v1126 = vpop.f32.mrb[0].mxu0
    %1127 = vmatprep.mubr.f32.mxu0 0.0
    %v1128 = vand.u32 %v196, 4294901760
    %v1129 = vsub.f32 %v196, %v1128
    %v1130 = vand.u32 %v1129, 4294901760
    %1131 = vmatmul.mubr.f32.gmra.mrb[0].mxu0 %v1130
    %v1132 = vpop.f32.mrb[0].mxu0
    %v1133 = vadd.f32 %v926, %v1132
    %v1134 = vpop.f32.mrb[0].mxu0
    %1135 = vmatprep.mubr.f32.mxu0 0.0
    %v1136 = vand.u32 %v199, 4294901760
    %v1137 = vsub.f32 %v199, %v1136
    %v1138 = vand.u32 %v1137, 4294901760
    %1139 = vmatmul.mubr.f32.gmra.mrb[0].mxu0 %v1138
    %v1140 = vpop.f32.mrb[0].mxu0
    %v1141 = vadd.f32 %v933, %v1140
    %v1142 = vpop.f32.mrb[0].mxu0
    %1143 = vmatprep.mubr.f32.mxu0 0.0
    %v1144 = vand.u32 %v202, 4294901760
    %v1145 = vsub.f32 %v202, %v1144
    %v1146 = vand.u32 %v1145, 4294901760
    %1147 = vmatmul.mubr.f32.gmra.mrb[0].mxu0 %v1146
    %v1148 = vpop.f32.mrb[0].mxu0
    %v1149 = vadd.f32 %v940, %v1148
    %v1150 = vpop.f32.mrb[0].mxu0
    %1151 = vdwg.mxu0
    %1152 = vmatprep.subr.mxu0 0.0
    %v1153 = vand.u32 %v205, 4294901760
    %v1154 = vsub.f32 %v205, %v1153
    %v1155 = vand.u32 %v1154, 4294901760
    %1156 = vmatpush1.xpose.msra.mxu0 %v1155
    %1157 = vmatprep.subr.mxu0 0.0
    %v1158 = vand.u32 %v208, 4294901760
    %v1159 = vsub.f32 %v208, %v1158
    %v1160 = vand.u32 %v1159, 4294901760
    %1161 = vmatpush1.xpose.msra.mxu0 %v1160
    %1162 = vmatprep.subr.mxu0 0.0
    %v1163 = vand.u32 %v211, 4294901760
    %v1164 = vsub.f32 %v211, %v1163
    %v1165 = vand.u32 %v1164, 4294901760
    %1166 = vmatpush1.xpose.msra.mxu0 %v1165
    %1167 = vmatprep.subr.mxu0 0.0
    %v1168 = vand.u32 %v214, 4294901760
    %v1169 = vsub.f32 %v214, %v1168
    %v1170 = vand.u32 %v1169, 4294901760
    %1171 = vmatpush1.xpose.msra.mxu0 %v1170
    %1172 = vmatprep.subr.mxu0 0.0
    %v1173 = vand.u32 %v217, 4294901760
    %v1174 = vsub.f32 %v217, %v1173
    %v1175 = vand.u32 %v1174, 4294901760
    %1176 = vmatpush1.xpose.msra.mxu0 %v1175
    %1177 = vmatprep.subr.mxu0 0.0
    %v1178 = vand.u32 %v220, 4294901760
    %v1179 = vsub.f32 %v220, %v1178
    %v1180 = vand.u32 %v1179, 4294901760
    %1181 = vmatpush1.xpose.msra.mxu0 %v1180
    %1182 = vmatprep.subr.mxu0 0.0
    %v1183 = vand.u32 %v223, 4294901760
    %v1184 = vsub.f32 %v223, %v1183
    %v1185 = vand.u32 %v1184, 4294901760
    %1186 = vmatpush1.xpose.msra.mxu0 %v1185
    %1187 = vmatprep.subr.mxu0 0.0
    %v1188 = vand.u32 %v226, 4294901760
    %v1189 = vsub.f32 %v226, %v1188
    %v1190 = vand.u32 %v1189, 4294901760
    %1191 = vmatpush1.xpose.msra.mxu0 %v1190
    %1192 = vmatprep.subr.mxu0 0.0
    %v1193 = vand.u32 %v229, 4294901760
    %v1194 = vsub.f32 %v229, %v1193
    %v1195 = vand.u32 %v1194, 4294901760
    %1196 = vmatpush1.xpose.msra.mxu0 %v1195
    %1197 = vmatprep.subr.mxu0 0.0
    %v1198 = vand.u32 %v232, 4294901760
    %v1199 = vsub.f32 %v232, %v1198
    %v1200 = vand.u32 %v1199, 4294901760
    %1201 = vmatpush1.xpose.msra.mxu0 %v1200
    %1202 = vmatprep.subr.mxu0 0.0
    %v1203 = vand.u32 %v235, 4294901760
    %v1204 = vsub.f32 %v235, %v1203
    %v1205 = vand.u32 %v1204, 4294901760
    %1206 = vmatpush1.xpose.msra.mxu0 %v1205
    %1207 = vmatprep.subr.mxu0 0.0
    %v1208 = vand.u32 %v238, 4294901760
    %v1209 = vsub.f32 %v238, %v1208
    %v1210 = vand.u32 %v1209, 4294901760
    %1211 = vmatpush1.xpose.msra.mxu0 %v1210
    %1212 = vmatprep.subr.mxu0 0.0
    %v1213 = vand.u32 %v241, 4294901760
    %v1214 = vsub.f32 %v241, %v1213
    %v1215 = vand.u32 %v1214, 4294901760
    %1216 = vmatpush1.xpose.msra.mxu0 %v1215
    %1217 = vmatprep.subr.mxu0 0.0
    %v1218 = vand.u32 %v244, 4294901760
    %v1219 = vsub.f32 %v244, %v1218
    %v1220 = vand.u32 %v1219, 4294901760
    %1221 = vmatpush1.xpose.msra.mxu0 %v1220
    %1222 = vmatprep.subr.mxu0 0.0
    %v1223 = vand.u32 %v247, 4294901760
    %v1224 = vsub.f32 %v247, %v1223
    %v1225 = vand.u32 %v1224, 4294901760
    %1226 = vmatpush1.xpose.msra.mxu0 %v1225
    %1227 = vmatprep.subr.mxu0 0.0
    %v1228 = vand.u32 %v250, 4294901760
    %v1229 = vsub.f32 %v250, %v1228
    %v1230 = vand.u32 %v1229, 4294901760
    %1231 = vmatpush1.xpose.msra.mxu0 %v1230
    %1232 = vmatprep.subr.mxu0 0.0
    %1233 = vmatpush1.xpose.msra.mxu0 0.0
    %1234 = vmatprep.subr.mxu0 0.0
    %1235 = vmatpush1.xpose.msra.mxu0 0.0
    %1236 = vmatprep.subr.mxu0 0.0
    %1237 = vmatpush1.xpose.msra.mxu0 0.0
    %1238 = vmatprep.subr.mxu0 0.0
    %1239 = vmatpush1.xpose.msra.mxu0 0.0
    %1240 = vmatprep.subr.mxu0 0.0
    %1241 = vmatpush1.xpose.msra.mxu0 0.0
    %1242 = vmatprep.subr.mxu0 0.0
    %1243 = vmatpush1.xpose.msra.mxu0 0.0
    %1244 = vmatprep.subr.mxu0 0.0
    %1245 = vmatpush1.xpose.msra.mxu0 0.0
    %1246 = vmatprep.subr.mxu0 0.0
    %1247 = vmatpush1.xpose.msra.mxu0 0.0
    %1248 = vmatprep.subr.mxu0 0.0
    %1249 = vmatpush1.xpose.msra.mxu0 0.0
    %1250 = vmatprep.subr.mxu0 0.0
    %1251 = vmatpush1.xpose.msra.mxu0 0.0
    %1252 = vmatprep.subr.mxu0 0.0
    %1253 = vmatpush1.xpose.msra.mxu0 0.0
    %1254 = vmatprep.subr.mxu0 0.0
    %1255 = vmatpush1.xpose.msra.mxu0 0.0
    %1256 = vmatprep.subr.mxu0 0.0
    %1257 = vmatpush1.xpose.msra.mxu0 0.0
    %1258 = vmatprep.subr.mxu0 0.0
    %1259 = vmatpush1.xpose.msra.mxu0 0.0
    %1260 = vmatprep.subr.mxu0 0.0
    %1261 = vmatpush1.xpose.msra.mxu0 0.0
    %1262 = vmatprep.subr.mxu0 0.0
    %1263 = vmatpush1.xpose.msra.mxu0 0.0
    %1264 = vmatprep.mubr.f32.mxu0 0.0
    %v1265 = vand.u32 %v157, 4294901760
    %1266 = vmatmul.mubr.f32.gmra.mrb[0].mxu0 %v1265
    %v1267 = vpop.f32.mrb[0].mxu0
    %v1268 = vadd.f32 %v1029, %v1267
    %v1269 = vpop.f32.mrb[0].mxu0
    %1270 = vmatprep.mubr.f32.mxu0 0.0
    %v1271 = vand.u32 %v160, 4294901760
    %1272 = vmatmul.mubr.f32.gmra.mrb[0].mxu0 %v1271
    %v1273 = vpop.f32.mrb[0].mxu0
    %v1274 = vadd.f32 %v1037, %v1273
    %v1275 = vpop.f32.mrb[0].mxu0
    %1276 = vmatprep.mubr.f32.mxu0 0.0
    %v1277 = vand.u32 %v163, 4294901760
    %1278 = vmatmul.mubr.f32.gmra.mrb[0].mxu0 %v1277
    %v1279 = vpop.f32.mrb[0].mxu0
    %v1280 = vadd.f32 %v1045, %v1279
    %v1281 = vpop.f32.mrb[0].mxu0
    %1282 = vmatprep.mubr.f32.mxu0 0.0
    %v1283 = vand.u32 %v166, 4294901760
    %1284 = vmatmul.mubr.f32.gmra.mrb[0].mxu0 %v1283
    %v1285 = vpop.f32.mrb[0].mxu0
    %v1286 = vadd.f32 %v1053, %v1285
    %v1287 = vpop.f32.mrb[0].mxu0
    %1288 = vmatprep.mubr.f32.mxu0 0.0
    %v1289 = vand.u32 %v169, 4294901760
    %1290 = vmatmul.mubr.f32.gmra.mrb[0].mxu0 %v1289
    %v1291 = vpop.f32.mrb[0].mxu0
    %v1292 = vadd.f32 %v1061, %v1291
    %v1293 = vpop.f32.mrb[0].mxu0
    %1294 = vmatprep.mubr.f32.mxu0 0.0
    %v1295 = vand.u32 %v172, 4294901760
    %1296 = vmatmul.mubr.f32.gmra.mrb[0].mxu0 %v1295
    %v1297 = vpop.f32.mrb[0].mxu0
    %v1298 = vadd.f32 %v1069, %v1297
    %v1299 = vpop.f32.mrb[0].mxu0
    %1300 = vmatprep.mubr.f32.mxu0 0.0
    %v1301 = vand.u32 %v175, 4294901760
    %1302 = vmatmul.mubr.f32.gmra.mrb[0].mxu0 %v1301
    %v1303 = vpop.f32.mrb[0].mxu0
    %v1304 = vadd.f32 %v1077, %v1303
    %v1305 = vpop.f32.mrb[0].mxu0
    %1306 = vmatprep.mubr.f32.mxu0 0.0
    %v1307 = vand.u32 %v178, 4294901760
    %1308 = vmatmul.mubr.f32.gmra.mrb[0].mxu0 %v1307
    %v1309 = vpop.f32.mrb[0].mxu0
    %v1310 = vadd.f32 %v1085, %v1309
    %v1311 = vpop.f32.mrb[0].mxu0
    %1312 = vmatprep.mubr.f32.mxu0 0.0
    %v1313 = vand.u32 %v181, 4294901760
    %1314 = vmatmul.mubr.f32.gmra.mrb[0].mxu0 %v1313
    %v1315 = vpop.f32.mrb[0].mxu0
    %v1316 = vadd.f32 %v1093, %v1315
    %v1317 = vpop.f32.mrb[0].mxu0
    %1318 = vmatprep.mubr.f32.mxu0 0.0
    %v1319 = vand.u32 %v184, 4294901760
    %1320 = vmatmul.mubr.f32.gmra.mrb[0].mxu0 %v1319
    %v1321 = vpop.f32.mrb[0].mxu0
    %v1322 = vadd.f32 %v1101, %v1321
    %v1323 = vpop.f32.mrb[0].mxu0
    %1324 = vmatprep.mubr.f32.mxu0 0.0
    %v1325 = vand.u32 %v187, 4294901760
    %1326 = vmatmul.mubr.f32.gmra.mrb[0].mxu0 %v1325
    %v1327 = vpop.f32.mrb[0].mxu0
    %v1328 = vadd.f32 %v1109, %v1327
    %v1329 = vpop.f32.mrb[0].mxu0
    %1330 = vmatprep.mubr.f32.mxu0 0.0
    %v1331 = vand.u32 %v190, 4294901760
    %1332 = vmatmul.mubr.f32.gmra.mrb[0].mxu0 %v1331
    %v1333 = vpop.f32.mrb[0].mxu0
    %v1334 = vadd.f32 %v1117, %v1333
    %v1335 = vpop.f32.mrb[0].mxu0
    %1336 = vmatprep.mubr.f32.mxu0 0.0
    %v1337 = vand.u32 %v193, 4294901760
    %1338 = vmatmul.mubr.f32.gmra.mrb[0].mxu0 %v1337
    %v1339 = vpop.f32.mrb[0].mxu0
    %v1340 = vadd.f32 %v1125, %v1339
    %v1341 = vpop.f32.mrb[0].mxu0
    %1342 = vmatprep.mubr.f32.mxu0 0.0
    %v1343 = vand.u32 %v196, 4294901760
    %1344 = vmatmul.mubr.f32.gmra.mrb[0].mxu0 %v1343
    %v1345 = vpop.f32.mrb[0].mxu0
    %v1346 = vadd.f32 %v1133, %v1345
    %v1347 = vpop.f32.mrb[0].mxu0
    %1348 = vmatprep.mubr.f32.mxu0 0.0
    %v1349 = vand.u32 %v199, 4294901760
    %1350 = vmatmul.mubr.f32.gmra.mrb[0].mxu0 %v1349
    %v1351 = vpop.f32.mrb[0].mxu0
    %v1352 = vadd.f32 %v1141, %v1351
    %v1353 = vpop.f32.mrb[0].mxu0
    %1354 = vmatprep.mubr.f32.mxu0 0.0
    %v1355 = vand.u32 %v202, 4294901760
    %1356 = vmatmul.mubr.f32.gmra.mrb[0].mxu0 %v1355
    %v1357 = vpop.f32.mrb[0].mxu0
    %v1358 = vadd.f32 %v1149, %v1357
    %v1359 = vpop.f32.mrb[0].mxu0
    %1360 = vdwg.mxu0
    %1361 = vmatprep.subr.mxu0 0.0
    %v1362 = vand.u32 %v205, 4294901760
    %1363 = vmatpush1.xpose.msra.mxu0 %v1362
    %1364 = vmatprep.subr.mxu0 0.0
    %v1365 = vand.u32 %v208, 4294901760
    %1366 = vmatpush1.xpose.msra.mxu0 %v1365
    %1367 = vmatprep.subr.mxu0 0.0
    %v1368 = vand.u32 %v211, 4294901760
    %1369 = vmatpush1.xpose.msra.mxu0 %v1368
    %1370 = vmatprep.subr.mxu0 0.0
    %v1371 = vand.u32 %v214, 4294901760
    %1372 = vmatpush1.xpose.msra.mxu0 %v1371
    %1373 = vmatprep.subr.mxu0 0.0
    %v1374 = vand.u32 %v217, 4294901760
    %1375 = vmatpush1.xpose.msra.mxu0 %v1374
    %1376 = vmatprep.subr.mxu0 0.0
    %v1377 = vand.u32 %v220, 4294901760
    %1378 = vmatpush1.xpose.msra.mxu0 %v1377
    %1379 = vmatprep.subr.mxu0 0.0
    %v1380 = vand.u32 %v223, 4294901760
    %1381 = vmatpush1.xpose.msra.mxu0 %v1380
    %1382 = vmatprep.subr.mxu0 0.0
    %v1383 = vand.u32 %v226, 4294901760
    %1384 = vmatpush1.xpose.msra.mxu0 %v1383
    %1385 = vmatprep.subr.mxu0 0.0
    %v1386 = vand.u32 %v229, 4294901760
    %1387 = vmatpush1.xpose.msra.mxu0 %v1386
    %1388 = vmatprep.subr.mxu0 0.0
    %v1389 = vand.u32 %v232, 4294901760
    %1390 = vmatpush1.xpose.msra.mxu0 %v1389
    %1391 = vmatprep.subr.mxu0 0.0
    %v1392 = vand.u32 %v235, 4294901760
    %1393 = vmatpush1.xpose.msra.mxu0 %v1392
    %1394 = vmatprep.subr.mxu0 0.0
    %v1395 = vand.u32 %v238, 4294901760
    %1396 = vmatpush1.xpose.msra.mxu0 %v1395
    %1397 = vmatprep.subr.mxu0 0.0
    %v1398 = vand.u32 %v241, 4294901760
    %1399 = vmatpush1.xpose.msra.mxu0 %v1398
    %1400 = vmatprep.subr.mxu0 0.0
    %v1401 = vand.u32 %v244, 4294901760
    %1402 = vmatpush1.xpose.msra.mxu0 %v1401
    %1403 = vmatprep.subr.mxu0 0.0
    %v1404 = vand.u32 %v247, 4294901760
    %1405 = vmatpush1.xpose.msra.mxu0 %v1404
    %1406 = vmatprep.subr.mxu0 0.0
    %v1407 = vand.u32 %v250, 4294901760
    %1408 = vmatpush1.xpose.msra.mxu0 %v1407
    %1409 = vmatprep.subr.mxu0 0.0
    %1410 = vmatpush1.xpose.msra.mxu0 0.0
    %1411 = vmatprep.subr.mxu0 0.0
    %1412 = vmatpush1.xpose.msra.mxu0 0.0
    %1413 = vmatprep.subr.mxu0 0.0
    %1414 = vmatpush1.xpose.msra.mxu0 0.0
    %1415 = vmatprep.subr.mxu0 0.0
    %1416 = vmatpush1.xpose.msra.mxu0 0.0
    %1417 = vmatprep.subr.mxu0 0.0
    %1418 = vmatpush1.xpose.msra.mxu0 0.0
    %1419 = vmatprep.subr.mxu0 0.0
    %1420 = vmatpush1.xpose.msra.mxu0 0.0
    %1421 = vmatprep.subr.mxu0 0.0
    %1422 = vmatpush1.xpose.msra.mxu0 0.0
    %1423 = vmatprep.subr.mxu0 0.0
    %1424 = vmatpush1.xpose.msra.mxu0 0.0
    %1425 = vmatprep.subr.mxu0 0.0
    %1426 = vmatpush1.xpose.msra.mxu0 0.0
    %1427 = vmatprep.subr.mxu0 0.0
    %1428 = vmatpush1.xpose.msra.mxu0 0.0
    %1429 = vmatprep.subr.mxu0 0.0
    %1430 = vmatpush1.xpose.msra.mxu0 0.0
    %1431 = vmatprep.subr.mxu0 0.0
    %1432 = vmatpush1.xpose.msra.mxu0 0.0
    %1433 = vmatprep.subr.mxu0 0.0
    %1434 = vmatpush1.xpose.msra.mxu0 0.0
    %1435 = vmatprep.subr.mxu0 0.0
    %1436 = vmatpush1.xpose.msra.mxu0 0.0
    %1437 = vmatprep.subr.mxu0 0.0
    %1438 = vmatpush1.xpose.msra.mxu0 0.0
    %1439 = vmatprep.subr.mxu0 0.0
    %1440 = vmatpush1.xpose.msra.mxu0 0.0
    %1441 = vmatprep.mubr.f32.mxu0 0.0
    %v1442 = vand.u32 %v157, 4294901760
    %1443 = vmatmul.mubr.f32.gmra.mrb[0].mxu0 %v1442
    %v1444 = vpop.f32.mrb[0].mxu0
    %v1445 = vadd.f32 %v1268, %v1444
    %v1446 = vpop.f32.mrb[0].mxu0
    %1447 = vmatprep.mubr.f32.mxu0 0.0
    %v1448 = vand.u32 %v160, 4294901760
    %1449 = vmatmul.mubr.f32.gmra.mrb[0].mxu0 %v1448
    %v1450 = vpop.f32.mrb[0].mxu0
    %v1451 = vadd.f32 %v1274, %v1450
    %v1452 = vpop.f32.mrb[0].mxu0
    %1453 = vmatprep.mubr.f32.mxu0 0.0
    %v1454 = vand.u32 %v163, 4294901760
    %1455 = vmatmul.mubr.f32.gmra.mrb[0].mxu0 %v1454
    %v1456 = vpop.f32.mrb[0].mxu0
    %v1457 = vadd.f32 %v1280, %v1456
    %v1458 = vpop.f32.mrb[0].mxu0
    %1459 = vmatprep.mubr.f32.mxu0 0.0
    %v1460 = vand.u32 %v166, 4294901760
    %1461 = vmatmul.mubr.f32.gmra.mrb[0].mxu0 %v1460
    %v1462 = vpop.f32.mrb[0].mxu0
    %v1463 = vadd.f32 %v1286, %v1462
    %v1464 = vpop.f32.mrb[0].mxu0
    %1465 = vmatprep.mubr.f32.mxu0 0.0
    %v1466 = vand.u32 %v169, 4294901760
    %1467 = vmatmul.mubr.f32.gmra.mrb[0].mxu0 %v1466
    %v1468 = vpop.f32.mrb[0].mxu0
    %v1469 = vadd.f32 %v1292, %v1468
    %v1470 = vpop.f32.mrb[0].mxu0
    %1471 = vmatprep.mubr.f32.mxu0 0.0
    %v1472 = vand.u32 %v172, 4294901760
    %1473 = vmatmul.mubr.f32.gmra.mrb[0].mxu0 %v1472
    %v1474 = vpop.f32.mrb[0].mxu0
    %v1475 = vadd.f32 %v1298, %v1474
    %v1476 = vpop.f32.mrb[0].mxu0
    %1477 = vmatprep.mubr.f32.mxu0 0.0
    %v1478 = vand.u32 %v175, 4294901760
    %1479 = vmatmul.mubr.f32.gmra.mrb[0].mxu0 %v1478
    %v1480 = vpop.f32.mrb[0].mxu0
    %v1481 = vadd.f32 %v1304, %v1480
    %v1482 = vpop.f32.mrb[0].mxu0
    %1483 = vmatprep.mubr.f32.mxu0 0.0
    %v1484 = vand.u32 %v178, 4294901760
    %1485 = vmatmul.mubr.f32.gmra.mrb[0].mxu0 %v1484
    %v1486 = vpop.f32.mrb[0].mxu0
    %v1487 = vadd.f32 %v1310, %v1486
    %v1488 = vpop.f32.mrb[0].mxu0
    %1489 = vmatprep.mubr.f32.mxu0 0.0
    %v1490 = vand.u32 %v181, 4294901760
    %1491 = vmatmul.mubr.f32.gmra.mrb[0].mxu0 %v1490
    %v1492 = vpop.f32.mrb[0].mxu0
    %v1493 = vadd.f32 %v1316, %v1492
    %v1494 = vpop.f32.mrb[0].mxu0
    %1495 = vmatprep.mubr.f32.mxu0 0.0
    %v1496 = vand.u32 %v184, 4294901760
    %1497 = vmatmul.mubr.f32.gmra.mrb[0].mxu0 %v1496
    %v1498 = vpop.f32.mrb[0].mxu0
    %v1499 = vadd.f32 %v1322, %v1498
    %v1500 = vpop.f32.mrb[0].mxu0
    %1501 = vmatprep.mubr.f32.mxu0 0.0
    %v1502 = vand.u32 %v187, 4294901760
    %1503 = vmatmul.mubr.f32.gmra.mrb[0].mxu0 %v1502
    %v1504 = vpop.f32.mrb[0].mxu0
    %v1505 = vadd.f32 %v1328, %v1504
    %v1506 = vpop.f32.mrb[0].mxu0
    %1507 = vmatprep.mubr.f32.mxu0 0.0
    %v1508 = vand.u32 %v190, 4294901760
    %1509 = vmatmul.mubr.f32.gmra.mrb[0].mxu0 %v1508
    %v1510 = vpop.f32.mrb[0].mxu0
    %v1511 = vadd.f32 %v1334, %v1510
    %v1512 = vpop.f32.mrb[0].mxu0
    %1513 = vmatprep.mubr.f32.mxu0 0.0
    %v1514 = vand.u32 %v193, 4294901760
    %1515 = vmatmul.mubr.f32.gmra.mrb[0].mxu0 %v1514
    %v1516 = vpop.f32.mrb[0].mxu0
    %v1517 = vadd.f32 %v1340, %v1516
    %v1518 = vpop.f32.mrb[0].mxu0
    %1519 = vmatprep.mubr.f32.mxu0 0.0
    %v1520 = vand.u32 %v196, 4294901760
    %1521 = vmatmul.mubr.f32.gmra.mrb[0].mxu0 %v1520
    %v1522 = vpop.f32.mrb[0].mxu0
    %v1523 = vadd.f32 %v1346, %v1522
    %v1524 = vpop.f32.mrb[0].mxu0
    %1525 = vmatprep.mubr.f32.mxu0 0.0
    %v1526 = vand.u32 %v199, 4294901760
    %1527 = vmatmul.mubr.f32.gmra.mrb[0].mxu0 %v1526
    %v1528 = vpop.f32.mrb[0].mxu0
    %v1529 = vadd.f32 %v1352, %v1528
    %v1530 = vpop.f32.mrb[0].mxu0
    %1531 = vmatprep.mubr.f32.mxu0 0.0
    %v1532 = vand.u32 %v202, 4294901760
    %1533 = vmatmul.mubr.f32.gmra.mrb[0].mxu0 %v1532
    %v1534 = vpop.f32.mrb[0].mxu0
    %v1535 = vadd.f32 %v1358, %v1534
    %v1536 = vpop.f32.mrb[0].mxu0
    %1537 = vdwg.mxu0
    %v1538 = vmax.f32 %v1445, 0.0
    %v1539 = vmax.f32 %v1451, 0.0
    %v1540 = vmax.f32 %v1457, 0.0
    %v1541 = vmax.f32 %v1463, 0.0
    %v1542 = vmax.f32 %v1469, 0.0
    %v1543 = vmax.f32 %v1475, 0.0
    %v1544 = vmax.f32 %v1481, 0.0
    %v1545 = vmax.f32 %v1487, 0.0
    %v1546 = vmax.f32 %v1493, 0.0
    %v1547 = vmax.f32 %v1499, 0.0
    %v1548 = vmax.f32 %v1505, 0.0
    %v1549 = vmax.f32 %v1511, 0.0
    %v1550 = vmax.f32 %v1517, 0.0
    %v1551 = vmax.f32 %v1523, 0.0
    %v1552 = vmax.f32 %v1529, 0.0
    %v1553 = vmax.f32 %v1535, 0.0
    %v1554 = vld [vmem:[%s3] sm:$0xff]
    %v1555 = vld [vmem:[%s3 + $0x8] sm:$0xff]
    %v1556 = vld [vmem:[%s3 + $0x10] sm:$0xff]
    %v1557 = vld [vmem:[%s3 + $0x18] sm:$0xff]
    %v1558 = vld [vmem:[%s3 + $0x20] sm:$0xff]
    %v1559 = vld [vmem:[%s3 + $0x28] sm:$0xff]
    %v1560 = vld [vmem:[%s3 + $0x30] sm:$0xff]
    %v1561 = vld [vmem:[%s3 + $0x38] sm:$0xff]
    %v1562 = vld [vmem:[%s4] sm:$0xff]
    %v1563 = vld [vmem:[%s4 + $0x8] sm:$0xff]
    %v1564 = vld [vmem:[%s4 + $0x10] sm:$0xff]
    %v1565 = vld [vmem:[%s4 + $0x18] sm:$0xff]
    %v1566 = vld [vmem:[%s4 + $0x20] sm:$0xff]
    %v1567 = vld [vmem:[%s4 + $0x28] sm:$0xff]
    %v1568 = vld [vmem:[%s4 + $0x30] sm:$0xff]
    %v1569 = vld [vmem:[%s4 + $0x38] sm:$0xff]
    %1571 = vset.pattern.permute.xlu0 0
    %1572 = vperm.xlu0 %1571, %v1562
    %v1573 = vpop.permute.xlu0 %1572
    %1576 = vset.pattern.permute.xlu0 0
    %1577 = vperm.xlu0 %1576, %v1563
    %v1578 = vpop.permute.xlu0 %1577
    %1581 = vset.pattern.permute.xlu0 0
    %1582 = vperm.xlu0 %1581, %v1564
    %v1583 = vpop.permute.xlu0 %1582
    %1586 = vset.pattern.permute.xlu0 0
    %1587 = vperm.xlu0 %1586, %v1565
    %v1588 = vpop.permute.xlu0 %1587
    %1591 = vset.pattern.permute.xlu0 0
    %1592 = vperm.xlu0 %1591, %v1566
    %v1593 = vpop.permute.xlu0 %1592
    %1596 = vset.pattern.permute.xlu0 0
    %1597 = vperm.xlu0 %1596, %v1567
    %v1598 = vpop.permute.xlu0 %1597
    %1601 = vset.pattern.permute.xlu0 0
    %1602 = vperm.xlu0 %1601, %v1568
    %v1603 = vpop.permute.xlu0 %1602
    %1606 = vset.pattern.permute.xlu0 0
    %1607 = vperm.xlu0 %1606, %v1569
    %v1608 = vpop.permute.xlu0 %1607
    %1610 = vmatprep.subr.mxu0 0.0
    %v1611 = vand.u32 %v1538, 4294901760
    %1612 = vmatpush1.msra.mxu0 %v1611
    %1613 = vmatprep.subr.mxu0 0.0
    %v1614 = vand.u32 %v1539, 4294901760
    %1615 = vmatpush1.msra.mxu0 %v1614
    %1616 = vmatprep.subr.mxu0 0.0
    %v1617 = vand.u32 %v1540, 4294901760
    %1618 = vmatpush1.msra.mxu0 %v1617
    %1619 = vmatprep.subr.mxu0 0.0
    %v1620 = vand.u32 %v1541, 4294901760
    %1621 = vmatpush1.msra.mxu0 %v1620
    %1622 = vmatprep.subr.mxu0 0.0
    %v1623 = vand.u32 %v1542, 4294901760
    %1624 = vmatpush1.msra.mxu0 %v1623
    %1625 = vmatprep.subr.mxu0 0.0
    %v1626 = vand.u32 %v1543, 4294901760
    %1627 = vmatpush1.msra.mxu0 %v1626
    %1628 = vmatprep.subr.mxu0 0.0
    %v1629 = vand.u32 %v1544, 4294901760
    %1630 = vmatpush1.msra.mxu0 %v1629
    %1631 = vmatprep.subr.mxu0 0.0
    %v1632 = vand.u32 %v1545, 4294901760
    %1633 = vmatpush1.msra.mxu0 %v1632
    %1634 = vmatprep.subr.mxu0 0.0
    %v1635 = vand.u32 %v1546, 4294901760
    %1636 = vmatpush1.msra.mxu0 %v1635
    %1637 = vmatprep.subr.mxu0 0.0
    %v1638 = vand.u32 %v1547, 4294901760
    %1639 = vmatpush1.msra.mxu0 %v1638
    %1640 = vmatprep.subr.mxu0 0.0
    %v1641 = vand.u32 %v1548, 4294901760
    %1642 = vmatpush1.msra.mxu0 %v1641
    %1643 = vmatprep.subr.mxu0 0.0
    %v1644 = vand.u32 %v1549, 4294901760
    %1645 = vmatpush1.msra.mxu0 %v1644
    %1646 = vmatprep.subr.mxu0 0.0
    %v1647 = vand.u32 %v1550, 4294901760
    %1648 = vmatpush1.msra.mxu0 %v1647
    %1649 = vmatprep.subr.mxu0 0.0
    %v1650 = vand.u32 %v1551, 4294901760
    %1651 = vmatpush1.msra.mxu0 %v1650
    %1652 = vmatprep.subr.mxu0 0.0
    %v1653 = vand.u32 %v1552, 4294901760
    %1654 = vmatpush1.msra.mxu0 %v1653
    %1655 = vmatprep.subr.mxu0 0.0
    %v1656 = vand.u32 %v1553, 4294901760
    %1657 = vmatpush1.msra.mxu0 %v1656
    %1658 = vmatprep.subr.mxu0 0.0
    %1659 = vmatpush1.msra.mxu0 0.0
    %1660 = vmatprep.subr.mxu0 0.0
    %1661 = vmatpush1.msra.mxu0 0.0
    %1662 = vmatprep.subr.mxu0 0.0
    %1663 = vmatpush1.msra.mxu0 0.0
    %1664 = vmatprep.subr.mxu0 0.0
    %1665 = vmatpush1.msra.mxu0 0.0
    %1666 = vmatprep.subr.mxu0 0.0
    %1667 = vmatpush1.msra.mxu0 0.0
    %1668 = vmatprep.subr.mxu0 0.0
    %1669 = vmatpush1.msra.mxu0 0.0
    %1670 = vmatprep.subr.mxu0 0.0
    %1671 = vmatpush1.msra.mxu0 0.0
    %1672 = vmatprep.subr.mxu0 0.0
    %1673 = vmatpush1.msra.mxu0 0.0
    %1674 = vmatprep.subr.mxu0 0.0
    %1675 = vmatpush1.msra.mxu0 0.0
    %1676 = vmatprep.subr.mxu0 0.0
    %1677 = vmatpush1.msra.mxu0 0.0
    %1678 = vmatprep.subr.mxu0 0.0
    %1679 = vmatpush1.msra.mxu0 0.0
    %1680 = vmatprep.subr.mxu0 0.0
    %1681 = vmatpush1.msra.mxu0 0.0
    %1682 = vmatprep.subr.mxu0 0.0
    %1683 = vmatpush1.msra.mxu0 0.0
    %1684 = vmatprep.subr.mxu0 0.0
    %1685 = vmatpush1.msra.mxu0 0.0
    %1686 = vmatprep.subr.mxu0 0.0
    %1687 = vmatpush1.msra.mxu0 0.0
    %1688 = vmatprep.subr.mxu0 0.0
    %1689 = vmatpush1.msra.mxu0 0.0
    %1690 = vmatprep.mubr.f32.mxu0 0.0
    %v1691 = vand.u32 %v1554, 4294901760
    %v1692 = vsub.f32 %v1554, %v1691
    %v1693 = vand.u32 %v1692, 4294901760
    %v1694 = vsub.f32 %v1692, %v1693
    %v1695 = vand.u32 %v1694, 4294901760
    %1696 = vmatmul.mubr.f32.gmra.mrb[0].mxu0 %v1695
    %v1697 = vpop.f32.mrb[0].mxu0
    %v1698 = vadd.f32 %v1573, %v1697
    %v1699 = vpop.f32.mrb[0].mxu0
    %1700 = vmatprep.mubr.f32.mxu0 0.0
    %v1701 = vand.u32 %v1555, 4294901760
    %v1702 = vsub.f32 %v1555, %v1701
    %v1703 = vand.u32 %v1702, 4294901760
    %v1704 = vsub.f32 %v1702, %v1703
    %v1705 = vand.u32 %v1704, 4294901760
    %1706 = vmatmul.mubr.f32.gmra.mrb[0].mxu0 %v1705
    %v1707 = vpop.f32.mrb[0].mxu0
    %v1708 = vadd.f32 %v1578, %v1707
    %v1709 = vpop.f32.mrb[0].mxu0
    %1710 = vmatprep.mubr.f32.mxu0 0.0
    %v1711 = vand.u32 %v1556, 4294901760
    %v1712 = vsub.f32 %v1556, %v1711
    %v1713 = vand.u32 %v1712, 4294901760
    %v1714 = vsub.f32 %v1712, %v1713
    %v1715 = vand.u32 %v1714, 4294901760
    %1716 = vmatmul.mubr.f32.gmra.mrb[0].mxu0 %v1715
    %v1717 = vpop.f32.mrb[0].mxu0
    %v1718 = vadd.f32 %v1583, %v1717
    %v1719 = vpop.f32.mrb[0].mxu0
    %1720 = vmatprep.mubr.f32.mxu0 0.0
    %v1721 = vand.u32 %v1557, 4294901760
    %v1722 = vsub.f32 %v1557, %v1721
    %v1723 = vand.u32 %v1722, 4294901760
    %v1724 = vsub.f32 %v1722, %v1723
    %v1725 = vand.u32 %v1724, 4294901760
    %1726 = vmatmul.mubr.f32.gmra.mrb[0].mxu0 %v1725
    %v1727 = vpop.f32.mrb[0].mxu0
    %v1728 = vadd.f32 %v1588, %v1727
    %v1729 = vpop.f32.mrb[0].mxu0
    %1730 = vmatprep.mubr.f32.mxu0 0.0
    %v1731 = vand.u32 %v1558, 4294901760
    %v1732 = vsub.f32 %v1558, %v1731
    %v1733 = vand.u32 %v1732, 4294901760
    %v1734 = vsub.f32 %v1732, %v1733
    %v1735 = vand.u32 %v1734, 4294901760
    %1736 = vmatmul.mubr.f32.gmra.mrb[0].mxu0 %v1735
    %v1737 = vpop.f32.mrb[0].mxu0
    %v1738 = vadd.f32 %v1593, %v1737
    %v1739 = vpop.f32.mrb[0].mxu0
    %1740 = vmatprep.mubr.f32.mxu0 0.0
    %v1741 = vand.u32 %v1559, 4294901760
    %v1742 = vsub.f32 %v1559, %v1741
    %v1743 = vand.u32 %v1742, 4294901760
    %v1744 = vsub.f32 %v1742, %v1743
    %v1745 = vand.u32 %v1744, 4294901760
    %1746 = vmatmul.mubr.f32.gmra.mrb[0].mxu0 %v1745
    %v1747 = vpop.f32.mrb[0].mxu0
    %v1748 = vadd.f32 %v1598, %v1747
    %v1749 = vpop.f32.mrb[0].mxu0
    %1750 = vmatprep.mubr.f32.mxu0 0.0
    %v1751 = vand.u32 %v1560, 4294901760
    %v1752 = vsub.f32 %v1560, %v1751
    %v1753 = vand.u32 %v1752, 4294901760
    %v1754 = vsub.f32 %v1752, %v1753
    %v1755 = vand.u32 %v1754, 4294901760
    %1756 = vmatmul.mubr.f32.gmra.mrb[0].mxu0 %v1755
    %v1757 = vpop.f32.mrb[0].mxu0
    %v1758 = vadd.f32 %v1603, %v1757
    %v1759 = vpop.f32.mrb[0].mxu0
    %1760 = vmatprep.mubr.f32.mxu0 0.0
    %v1761 = vand.u32 %v1561, 4294901760
    %v1762 = vsub.f32 %v1561, %v1761
    %v1763 = vand.u32 %v1762, 4294901760
    %v1764 = vsub.f32 %v1762, %v1763
    %v1765 = vand.u32 %v1764, 4294901760
    %1766 = vmatmul.mubr.f32.gmra.mrb[0].mxu0 %v1765
    %v1767 = vpop.f32.mrb[0].mxu0
    %v1768 = vadd.f32 %v1608, %v1767
    %v1769 = vpop.f32.mrb[0].mxu0
    %1770 = vdwg.mxu0
    %1771 = vmatprep.subr.mxu0 0.0
    %v1772 = vand.u32 %v1538, 4294901760
    %v1773 = vsub.f32 %v1538, %v1772
    %v1774 = vand.u32 %v1773, 4294901760
    %v1775 = vsub.f32 %v1773, %v1774
    %v1776 = vand.u32 %v1775, 4294901760
    %1777 = vmatpush1.msra.mxu0 %v1776
    %1778 = vmatprep.subr.mxu0 0.0
    %v1779 = vand.u32 %v1539, 4294901760
    %v1780 = vsub.f32 %v1539, %v1779
    %v1781 = vand.u32 %v1780, 4294901760
    %v1782 = vsub.f32 %v1780, %v1781
    %v1783 = vand.u32 %v1782, 4294901760
    %1784 = vmatpush1.msra.mxu0 %v1783
    %1785 = vmatprep.subr.mxu0 0.0
    %v1786 = vand.u32 %v1540, 4294901760
    %v1787 = vsub.f32 %v1540, %v1786
    %v1788 = vand.u32 %v1787, 4294901760
    %v1789 = vsub.f32 %v1787, %v1788
    %v1790 = vand.u32 %v1789, 4294901760
    %1791 = vmatpush1.msra.mxu0 %v1790
    %1792 = vmatprep.subr.mxu0 0.0
    %v1793 = vand.u32 %v1541, 4294901760
    %v1794 = vsub.f32 %v1541, %v1793
    %v1795 = vand.u32 %v1794, 4294901760
    %v1796 = vsub.f32 %v1794, %v1795
    %v1797 = vand.u32 %v1796, 4294901760
    %1798 = vmatpush1.msra.mxu0 %v1797
    %1799 = vmatprep.subr.mxu0 0.0
    %v1800 = vand.u32 %v1542, 4294901760
    %v1801 = vsub.f32 %v1542, %v1800
    %v1802 = vand.u32 %v1801, 4294901760
    %v1803 = vsub.f32 %v1801, %v1802
    %v1804 = vand.u32 %v1803, 4294901760
    %1805 = vmatpush1.msra.mxu0 %v1804
    %1806 = vmatprep.subr.mxu0 0.0
    %v1807 = vand.u32 %v1543, 4294901760
    %v1808 = vsub.f32 %v1543, %v1807
    %v1809 = vand.u32 %v1808, 4294901760
    %v1810 = vsub.f32 %v1808, %v1809
    %v1811 = vand.u32 %v1810, 4294901760
    %1812 = vmatpush1.msra.mxu0 %v1811
    %1813 = vmatprep.subr.mxu0 0.0
    %v1814 = vand.u32 %v1544, 4294901760
    %v1815 = vsub.f32 %v1544, %v1814
    %v1816 = vand.u32 %v1815, 4294901760
    %v1817 = vsub.f32 %v1815, %v1816
    %v1818 = vand.u32 %v1817, 4294901760
    %1819 = vmatpush1.msra.mxu0 %v1818
    %1820 = vmatprep.subr.mxu0 0.0
    %v1821 = vand.u32 %v1545, 4294901760
    %v1822 = vsub.f32 %v1545, %v1821
    %v1823 = vand.u32 %v1822, 4294901760
    %v1824 = vsub.f32 %v1822, %v1823
    %v1825 = vand.u32 %v1824, 4294901760
    %1826 = vmatpush1.msra.mxu0 %v1825
    %1827 = vmatprep.subr.mxu0 0.0
    %v1828 = vand.u32 %v1546, 4294901760
    %v1829 = vsub.f32 %v1546, %v1828
    %v1830 = vand.u32 %v1829, 4294901760
    %v1831 = vsub.f32 %v1829, %v1830
    %v1832 = vand.u32 %v1831, 4294901760
    %1833 = vmatpush1.msra.mxu0 %v1832
    %1834 = vmatprep.subr.mxu0 0.0
    %v1835 = vand.u32 %v1547, 4294901760
    %v1836 = vsub.f32 %v1547, %v1835
    %v1837 = vand.u32 %v1836, 4294901760
    %v1838 = vsub.f32 %v1836, %v1837
    %v1839 = vand.u32 %v1838, 4294901760
    %1840 = vmatpush1.msra.mxu0 %v1839
    %1841 = vmatprep.subr.mxu0 0.0
    %v1842 = vand.u32 %v1548, 4294901760
    %v1843 = vsub.f32 %v1548, %v1842
    %v1844 = vand.u32 %v1843, 4294901760
    %v1845 = vsub.f32 %v1843, %v1844
    %v1846 = vand.u32 %v1845, 4294901760
    %1847 = vmatpush1.msra.mxu0 %v1846
    %1848 = vmatprep.subr.mxu0 0.0
    %v1849 = vand.u32 %v1549, 4294901760
    %v1850 = vsub.f32 %v1549, %v1849
    %v1851 = vand.u32 %v1850, 4294901760
    %v1852 = vsub.f32 %v1850, %v1851
    %v1853 = vand.u32 %v1852, 4294901760
    %1854 = vmatpush1.msra.mxu0 %v1853
    %1855 = vmatprep.subr.mxu0 0.0
    %v1856 = vand.u32 %v1550, 4294901760
    %v1857 = vsub.f32 %v1550, %v1856
    %v1858 = vand.u32 %v1857, 4294901760
    %v1859 = vsub.f32 %v1857, %v1858
    %v1860 = vand.u32 %v1859, 4294901760
    %1861 = vmatpush1.msra.mxu0 %v1860
    %1862 = vmatprep.subr.mxu0 0.0
    %v1863 = vand.u32 %v1551, 4294901760
    %v1864 = vsub.f32 %v1551, %v1863
    %v1865 = vand.u32 %v1864, 4294901760
    %v1866 = vsub.f32 %v1864, %v1865
    %v1867 = vand.u32 %v1866, 4294901760
    %1868 = vmatpush1.msra.mxu0 %v1867
    %1869 = vmatprep.subr.mxu0 0.0
    %v1870 = vand.u32 %v1552, 4294901760
    %v1871 = vsub.f32 %v1552, %v1870
    %v1872 = vand.u32 %v1871, 4294901760
    %v1873 = vsub.f32 %v1871, %v1872
    %v1874 = vand.u32 %v1873, 4294901760
    %1875 = vmatpush1.msra.mxu0 %v1874
    %1876 = vmatprep.subr.mxu0 0.0
    %v1877 = vand.u32 %v1553, 4294901760
    %v1878 = vsub.f32 %v1553, %v1877
    %v1879 = vand.u32 %v1878, 4294901760
    %v1880 = vsub.f32 %v1878, %v1879
    %v1881 = vand.u32 %v1880, 4294901760
    %1882 = vmatpush1.msra.mxu0 %v1881
    %1883 = vmatprep.subr.mxu0 0.0
    %1884 = vmatpush1.msra.mxu0 0.0
    %1885 = vmatprep.subr.mxu0 0.0
    %1886 = vmatpush1.msra.mxu0 0.0
    %1887 = vmatprep.subr.mxu0 0.0
    %1888 = vmatpush1.msra.mxu0 0.0
    %1889 = vmatprep.subr.mxu0 0.0
    %1890 = vmatpush1.msra.mxu0 0.0
    %1891 = vmatprep.subr.mxu0 0.0
    %1892 = vmatpush1.msra.mxu0 0.0
    %1893 = vmatprep.subr.mxu0 0.0
    %1894 = vmatpush1.msra.mxu0 0.0
    %1895 = vmatprep.subr.mxu0 0.0
    %1896 = vmatpush1.msra.mxu0 0.0
    %1897 = vmatprep.subr.mxu0 0.0
    %1898 = vmatpush1.msra.mxu0 0.0
    %1899 = vmatprep.subr.mxu0 0.0
    %1900 = vmatpush1.msra.mxu0 0.0
    %1901 = vmatprep.subr.mxu0 0.0
    %1902 = vmatpush1.msra.mxu0 0.0
    %1903 = vmatprep.subr.mxu0 0.0
    %1904 = vmatpush1.msra.mxu0 0.0
    %1905 = vmatprep.subr.mxu0 0.0
    %1906 = vmatpush1.msra.mxu0 0.0
    %1907 = vmatprep.subr.mxu0 0.0
    %1908 = vmatpush1.msra.mxu0 0.0
    %1909 = vmatprep.subr.mxu0 0.0
    %1910 = vmatpush1.msra.mxu0 0.0
    %1911 = vmatprep.subr.mxu0 0.0
    %1912 = vmatpush1.msra.mxu0 0.0
    %1913 = vmatprep.subr.mxu0 0.0
    %1914 = vmatpush1.msra.mxu0 0.0
    %1915 = vmatprep.mubr.f32.mxu0 0.0
    %v1916 = vand.u32 %v1554, 4294901760
    %1917 = vmatmul.mubr.f32.gmra.mrb[0].mxu0 %v1916
    %v1918 = vpop.f32.mrb[0].mxu0
    %v1919 = vadd.f32 %v1698, %v1918
    %v1920 = vpop.f32.mrb[0].mxu0
    %1921 = vmatprep.mubr.f32.mxu0 0.0
    %v1922 = vand.u32 %v1555, 4294901760
    %1923 = vmatmul.mubr.f32.gmra.mrb[0].mxu0 %v1922
    %v1924 = vpop.f32.mrb[0].mxu0
    %v1925 = vadd.f32 %v1708, %v1924
    %v1926 = vpop.f32.mrb[0].mxu0
    %1927 = vmatprep.mubr.f32.mxu0 0.0
    %v1928 = vand.u32 %v1556, 4294901760
    %1929 = vmatmul.mubr.f32.gmra.mrb[0].mxu0 %v1928
    %v1930 = vpop.f32.mrb[0].mxu0
    %v1931 = vadd.f32 %v1718, %v1930
    %v1932 = vpop.f32.mrb[0].mxu0
    %1933 = vmatprep.mubr.f32.mxu0 0.0
    %v1934 = vand.u32 %v1557, 4294901760
    %1935 = vmatmul.mubr.f32.gmra.mrb[0].mxu0 %v1934
    %v1936 = vpop.f32.mrb[0].mxu0
    %v1937 = vadd.f32 %v1728, %v1936
    %v1938 = vpop.f32.mrb[0].mxu0
    %1939 = vmatprep.mubr.f32.mxu0 0.0
    %v1940 = vand.u32 %v1558, 4294901760
    %1941 = vmatmul.mubr.f32.gmra.mrb[0].mxu0 %v1940
    %v1942 = vpop.f32.mrb[0].mxu0
    %v1943 = vadd.f32 %v1738, %v1942
    %v1944 = vpop.f32.mrb[0].mxu0
    %1945 = vmatprep.mubr.f32.mxu0 0.0
    %v1946 = vand.u32 %v1559, 4294901760
    %1947 = vmatmul.mubr.f32.gmra.mrb[0].mxu0 %v1946
    %v1948 = vpop.f32.mrb[0].mxu0
    %v1949 = vadd.f32 %v1748, %v1948
    %v1950 = vpop.f32.mrb[0].mxu0
    %1951 = vmatprep.mubr.f32.mxu0 0.0
    %v1952 = vand.u32 %v1560, 4294901760
    %1953 = vmatmul.mubr.f32.gmra.mrb[0].mxu0 %v1952
    %v1954 = vpop.f32.mrb[0].mxu0
    %v1955 = vadd.f32 %v1758, %v1954
    %v1956 = vpop.f32.mrb[0].mxu0
    %1957 = vmatprep.mubr.f32.mxu0 0.0
    %v1958 = vand.u32 %v1561, 4294901760
    %1959 = vmatmul.mubr.f32.gmra.mrb[0].mxu0 %v1958
    %v1960 = vpop.f32.mrb[0].mxu0
    %v1961 = vadd.f32 %v1768, %v1960
    %v1962 = vpop.f32.mrb[0].mxu0
    %1963 = vdwg.mxu0
    %1964 = vmatprep.subr.mxu0 0.0
    %v1965 = vand.u32 %v1538, 4294901760
    %v1966 = vsub.f32 %v1538, %v1965
    %1967 = vmatpush1.msra.mxu0 %v1966
    %1968 = vmatprep.subr.mxu0 0.0
    %v1969 = vand.u32 %v1539, 4294901760
    %v1970 = vsub.f32 %v1539, %v1969
    %1971 = vmatpush1.msra.mxu0 %v1970
    %1972 = vmatprep.subr.mxu0 0.0
    %v1973 = vand.u32 %v1540, 4294901760
    %v1974 = vsub.f32 %v1540, %v1973
    %1975 = vmatpush1.msra.mxu0 %v1974
    %1976 = vmatprep.subr.mxu0 0.0
    %v1977 = vand.u32 %v1541, 4294901760
    %v1978 = vsub.f32 %v1541, %v1977
    %1979 = vmatpush1.msra.mxu0 %v1978
    %1980 = vmatprep.subr.mxu0 0.0
    %v1981 = vand.u32 %v1542, 4294901760
    %v1982 = vsub.f32 %v1542, %v1981
    %1983 = vmatpush1.msra.mxu0 %v1982
    %1984 = vmatprep.subr.mxu0 0.0
    %v1985 = vand.u32 %v1543, 4294901760
    %v1986 = vsub.f32 %v1543, %v1985
    %1987 = vmatpush1.msra.mxu0 %v1986
    %1988 = vmatprep.subr.mxu0 0.0
    %v1989 = vand.u32 %v1544, 4294901760
    %v1990 = vsub.f32 %v1544, %v1989
    %1991 = vmatpush1.msra.mxu0 %v1990
    %1992 = vmatprep.subr.mxu0 0.0
    %v1993 = vand.u32 %v1545, 4294901760
    %v1994 = vsub.f32 %v1545, %v1993
    %1995 = vmatpush1.msra.mxu0 %v1994
    %1996 = vmatprep.subr.mxu0 0.0
    %v1997 = vand.u32 %v1546, 4294901760
    %v1998 = vsub.f32 %v1546, %v1997
    %1999 = vmatpush1.msra.mxu0 %v1998
    %2000 = vmatprep.subr.mxu0 0.0
    %v2001 = vand.u32 %v1547, 4294901760
    %v2002 = vsub.f32 %v1547, %v2001
    %2003 = vmatpush1.msra.mxu0 %v2002
    %2004 = vmatprep.subr.mxu0 0.0
    %v2005 = vand.u32 %v1548, 4294901760
    %v2006 = vsub.f32 %v1548, %v2005
    %2007 = vmatpush1.msra.mxu0 %v2006
    %2008 = vmatprep.subr.mxu0 0.0
    %v2009 = vand.u32 %v1549, 4294901760
    %v2010 = vsub.f32 %v1549, %v2009
    %2011 = vmatpush1.msra.mxu0 %v2010
    %2012 = vmatprep.subr.mxu0 0.0
    %v2013 = vand.u32 %v1550, 4294901760
    %v2014 = vsub.f32 %v1550, %v2013
    %2015 = vmatpush1.msra.mxu0 %v2014
    %2016 = vmatprep.subr.mxu0 0.0
    %v2017 = vand.u32 %v1551, 4294901760
    %v2018 = vsub.f32 %v1551, %v2017
    %2019 = vmatpush1.msra.mxu0 %v2018
    %2020 = vmatprep.subr.mxu0 0.0
    %v2021 = vand.u32 %v1552, 4294901760
    %v2022 = vsub.f32 %v1552, %v2021
    %2023 = vmatpush1.msra.mxu0 %v2022
    %2024 = vmatprep.subr.mxu0 0.0
    %v2025 = vand.u32 %v1553, 4294901760
    %v2026 = vsub.f32 %v1553, %v2025
    %2027 = vmatpush1.msra.mxu0 %v2026
    %2028 = vmatprep.subr.mxu0 0.0
    %2029 = vmatpush1.msra.mxu0 0.0
    %2030 = vmatprep.subr.mxu0 0.0
    %2031 = vmatpush1.msra.mxu0 0.0
    %2032 = vmatprep.subr.mxu0 0.0
    %2033 = vmatpush1.msra.mxu0 0.0
    %2034 = vmatprep.subr.mxu0 0.0
    %2035 = vmatpush1.msra.mxu0 0.0
    %2036 = vmatprep.subr.mxu0 0.0
    %2037 = vmatpush1.msra.mxu0 0.0
    %2038 = vmatprep.subr.mxu0 0.0
    %2039 = vmatpush1.msra.mxu0 0.0
    %2040 = vmatprep.subr.mxu0 0.0
    %2041 = vmatpush1.msra.mxu0 0.0
    %2042 = vmatprep.subr.mxu0 0.0
    %2043 = vmatpush1.msra.mxu0 0.0
    %2044 = vmatprep.subr.mxu0 0.0
    %2045 = vmatpush1.msra.mxu0 0.0
    %2046 = vmatprep.subr.mxu0 0.0
    %2047 = vmatpush1.msra.mxu0 0.0
    %2048 = vmatprep.subr.mxu0 0.0
    %2049 = vmatpush1.msra.mxu0 0.0
    %2050 = vmatprep.subr.mxu0 0.0
    %2051 = vmatpush1.msra.mxu0 0.0
    %2052 = vmatprep.subr.mxu0 0.0
    %2053 = vmatpush1.msra.mxu0 0.0
    %2054 = vmatprep.subr.mxu0 0.0
    %2055 = vmatpush1.msra.mxu0 0.0
    %2056 = vmatprep.subr.mxu0 0.0
    %2057 = vmatpush1.msra.mxu0 0.0
    %2058 = vmatprep.subr.mxu0 0.0
    %2059 = vmatpush1.msra.mxu0 0.0
    %2060 = vmatprep.mubr.f32.mxu0 0.0
    %v2061 = vand.u32 %v1554, 4294901760
    %v2062 = vsub.f32 %v1554, %v2061
    %2063 = vmatmul.mubr.f32.gmra.mrb[0].mxu0 %v2062
    %v2064 = vpop.f32.mrb[0].mxu0
    %v2065 = vadd.f32 %v1919, %v2064
    %v2066 = vpop.f32.mrb[0].mxu0
    %2067 = vmatprep.mubr.f32.mxu0 0.0
    %v2068 = vand.u32 %v1555, 4294901760
    %v2069 = vsub.f32 %v1555, %v2068
    %2070 = vmatmul.mubr.f32.gmra.mrb[0].mxu0 %v2069
    %v2071 = vpop.f32.mrb[0].mxu0
    %v2072 = vadd.f32 %v1925, %v2071
    %v2073 = vpop.f32.mrb[0].mxu0
    %2074 = vmatprep.mubr.f32.mxu0 0.0
    %v2075 = vand.u32 %v1556, 4294901760
    %v2076 = vsub.f32 %v1556, %v2075
    %2077 = vmatmul.mubr.f32.gmra.mrb[0].mxu0 %v2076
    %v2078 = vpop.f32.mrb[0].mxu0
    %v2079 = vadd.f32 %v1931, %v2078
    %v2080 = vpop.f32.mrb[0].mxu0
    %2081 = vmatprep.mubr.f32.mxu0 0.0
    %v2082 = vand.u32 %v1557, 4294901760
    %v2083 = vsub.f32 %v1557, %v2082
    %2084 = vmatmul.mubr.f32.gmra.mrb[0].mxu0 %v2083
    %v2085 = vpop.f32.mrb[0].mxu0
    %v2086 = vadd.f32 %v1937, %v2085
    %v2087 = vpop.f32.mrb[0].mxu0
    %2088 = vmatprep.mubr.f32.mxu0 0.0
    %v2089 = vand.u32 %v1558, 4294901760
    %v2090 = vsub.f32 %v1558, %v2089
    %2091 = vmatmul.mubr.f32.gmra.mrb[0].mxu0 %v2090
    %v2092 = vpop.f32.mrb[0].mxu0
    %v2093 = vadd.f32 %v1943, %v2092
    %v2094 = vpop.f32.mrb[0].mxu0
    %2095 = vmatprep.mubr.f32.mxu0 0.0
    %v2096 = vand.u32 %v1559, 4294901760
    %v2097 = vsub.f32 %v1559, %v2096
    %2098 = vmatmul.mubr.f32.gmra.mrb[0].mxu0 %v2097
    %v2099 = vpop.f32.mrb[0].mxu0
    %v2100 = vadd.f32 %v1949, %v2099
    %v2101 = vpop.f32.mrb[0].mxu0
    %2102 = vmatprep.mubr.f32.mxu0 0.0
    %v2103 = vand.u32 %v1560, 4294901760
    %v2104 = vsub.f32 %v1560, %v2103
    %2105 = vmatmul.mubr.f32.gmra.mrb[0].mxu0 %v2104
    %v2106 = vpop.f32.mrb[0].mxu0
    %v2107 = vadd.f32 %v1955, %v2106
    %v2108 = vpop.f32.mrb[0].mxu0
    %2109 = vmatprep.mubr.f32.mxu0 0.0
    %v2110 = vand.u32 %v1561, 4294901760
    %v2111 = vsub.f32 %v1561, %v2110
    %2112 = vmatmul.mubr.f32.gmra.mrb[0].mxu0 %v2111
    %v2113 = vpop.f32.mrb[0].mxu0
    %v2114 = vadd.f32 %v1961, %v2113
    %v2115 = vpop.f32.mrb[0].mxu0
    %2116 = vdwg.mxu0
    %2117 = vmatprep.subr.mxu0 0.0
    %v2118 = vand.u32 %v1538, 4294901760
    %2119 = vmatpush1.msra.mxu0 %v2118
    %2120 = vmatprep.subr.mxu0 0.0
    %v2121 = vand.u32 %v1539, 4294901760
    %2122 = vmatpush1.msra.mxu0 %v2121
    %2123 = vmatprep.subr.mxu0 0.0
    %v2124 = vand.u32 %v1540, 4294901760
    %2125 = vmatpush1.msra.mxu0 %v2124
    %2126 = vmatprep.subr.mxu0 0.0
    %v2127 = vand.u32 %v1541, 4294901760
    %2128 = vmatpush1.msra.mxu0 %v2127
    %2129 = vmatprep.subr.mxu0 0.0
    %v2130 = vand.u32 %v1542, 4294901760
    %2131 = vmatpush1.msra.mxu0 %v2130
    %2132 = vmatprep.subr.mxu0 0.0
    %v2133 = vand.u32 %v1543, 4294901760
    %2134 = vmatpush1.msra.mxu0 %v2133
    %2135 = vmatprep.subr.mxu0 0.0
    %v2136 = vand.u32 %v1544, 4294901760
    %2137 = vmatpush1.msra.mxu0 %v2136
    %2138 = vmatprep.subr.mxu0 0.0
    %v2139 = vand.u32 %v1545, 4294901760
    %2140 = vmatpush1.msra.mxu0 %v2139
    %2141 = vmatprep.subr.mxu0 0.0
    %v2142 = vand.u32 %v1546, 4294901760
    %2143 = vmatpush1.msra.mxu0 %v2142
    %2144 = vmatprep.subr.mxu0 0.0
    %v2145 = vand.u32 %v1547, 4294901760
    %2146 = vmatpush1.msra.mxu0 %v2145
    %2147 = vmatprep.subr.mxu0 0.0
    %v2148 = vand.u32 %v1548, 4294901760
    %2149 = vmatpush1.msra.mxu0 %v2148
    %2150 = vmatprep.subr.mxu0 0.0
    %v2151 = vand.u32 %v1549, 4294901760
    %2152 = vmatpush1.msra.mxu0 %v2151
    %2153 = vmatprep.subr.mxu0 0.0
    %v2154 = vand.u32 %v1550, 4294901760
    %2155 = vmatpush1.msra.mxu0 %v2154
    %2156 = vmatprep.subr.mxu0 0.0
    %v2157 = vand.u32 %v1551, 4294901760
    %2158 = vmatpush1.msra.mxu0 %v2157
    %2159 = vmatprep.subr.mxu0 0.0
    %v2160 = vand.u32 %v1552, 4294901760
    %2161 = vmatpush1.msra.mxu0 %v2160
    %2162 = vmatprep.subr.mxu0 0.0
    %v2163 = vand.u32 %v1553, 4294901760
    %2164 = vmatpush1.msra.mxu0 %v2163
    %2165 = vmatprep.subr.mxu0 0.0
    %2166 = vmatpush1.msra.mxu0 0.0
    %2167 = vmatprep.subr.mxu0 0.0
    %2168 = vmatpush1.msra.mxu0 0.0
    %2169 = vmatprep.subr.mxu0 0.0
    %2170 = vmatpush1.msra.mxu0 0.0
    %2171 = vmatprep.subr.mxu0 0.0
    %2172 = vmatpush1.msra.mxu0 0.0
    %2173 = vmatprep.subr.mxu0 0.0
    %2174 = vmatpush1.msra.mxu0 0.0
    %2175 = vmatprep.subr.mxu0 0.0
    %2176 = vmatpush1.msra.mxu0 0.0
    %2177 = vmatprep.subr.mxu0 0.0
    %2178 = vmatpush1.msra.mxu0 0.0
    %2179 = vmatprep.subr.mxu0 0.0
    %2180 = vmatpush1.msra.mxu0 0.0
    %2181 = vmatprep.subr.mxu0 0.0
    %2182 = vmatpush1.msra.mxu0 0.0
    %2183 = vmatprep.subr.mxu0 0.0
    %2184 = vmatpush1.msra.mxu0 0.0
    %2185 = vmatprep.subr.mxu0 0.0
    %2186 = vmatpush1.msra.mxu0 0.0
    %2187 = vmatprep.subr.mxu0 0.0
    %2188 = vmatpush1.msra.mxu0 0.0
    %2189 = vmatprep.subr.mxu0 0.0
    %2190 = vmatpush1.msra.mxu0 0.0
    %2191 = vmatprep.subr.mxu0 0.0
    %2192 = vmatpush1.msra.mxu0 0.0
    %2193 = vmatprep.subr.mxu0 0.0
    %2194 = vmatpush1.msra.mxu0 0.0
    %2195 = vmatprep.subr.mxu0 0.0
    %2196 = vmatpush1.msra.mxu0 0.0
    %2197 = vmatprep.mubr.f32.mxu0 0.0
    %v2198 = vand.u32 %v1554, 4294901760
    %v2199 = vsub.f32 %v1554, %v2198
    %v2200 = vand.u32 %v2199, 4294901760
    %2201 = vmatmul.mubr.f32.gmra.mrb[0].mxu0 %v2200
    %v2202 = vpop.f32.mrb[0].mxu0
    %v2203 = vadd.f32 %v2065, %v2202
    %v2204 = vpop.f32.mrb[0].mxu0
    %2205 = vmatprep.mubr.f32.mxu0 0.0
    %v2206 = vand.u32 %v1555, 4294901760
    %v2207 = vsub.f32 %v1555, %v2206
    %v2208 = vand.u32 %v2207, 4294901760
    %2209 = vmatmul.mubr.f32.gmra.mrb[0].mxu0 %v2208
    %v2210 = vpop.f32.mrb[0].mxu0
    %v2211 = vadd.f32 %v2072, %v2210
    %v2212 = vpop.f32.mrb[0].mxu0
    %2213 = vmatprep.mubr.f32.mxu0 0.0
    %v2214 = vand.u32 %v1556, 4294901760
    %v2215 = vsub.f32 %v1556, %v2214
    %v2216 = vand.u32 %v2215, 4294901760
    %2217 = vmatmul.mubr.f32.gmra.mrb[0].mxu0 %v2216
    %v2218 = vpop.f32.mrb[0].mxu0
    %v2219 = vadd.f32 %v2079, %v2218
    %v2220 = vpop.f32.mrb[0].mxu0
    %2221 = vmatprep.mubr.f32.mxu0 0.0
    %v2222 = vand.u32 %v1557, 4294901760
    %v2223 = vsub.f32 %v1557, %v2222
    %v2224 = vand.u32 %v2223, 4294901760
    %2225 = vmatmul.mubr.f32.gmra.mrb[0].mxu0 %v2224
    %v2226 = vpop.f32.mrb[0].mxu0
    %v2227 = vadd.f32 %v2086, %v2226
    %v2228 = vpop.f32.mrb[0].mxu0
    %2229 = vmatprep.mubr.f32.mxu0 0.0
    %v2230 = vand.u32 %v1558, 4294901760
    %v2231 = vsub.f32 %v1558, %v2230
    %v2232 = vand.u32 %v2231, 4294901760
    %2233 = vmatmul.mubr.f32.gmra.mrb[0].mxu0 %v2232
    %v2234 = vpop.f32.mrb[0].mxu0
    %v2235 = vadd.f32 %v2093, %v2234
    %v2236 = vpop.f32.mrb[0].mxu0
    %2237 = vmatprep.mubr.f32.mxu0 0.0
    %v2238 = vand.u32 %v1559, 4294901760
    %v2239 = vsub.f32 %v1559, %v2238
    %v2240 = vand.u32 %v2239, 4294901760
    %2241 = vmatmul.mubr.f32.gmra.mrb[0].mxu0 %v2240
    %v2242 = vpop.f32.mrb[0].mxu0
    %v2243 = vadd.f32 %v2100, %v2242
    %v2244 = vpop.f32.mrb[0].mxu0
    %2245 = vmatprep.mubr.f32.mxu0 0.0
    %v2246 = vand.u32 %v1560, 4294901760
    %v2247 = vsub.f32 %v1560, %v2246
    %v2248 = vand.u32 %v2247, 4294901760
    %2249 = vmatmul.mubr.f32.gmra.mrb[0].mxu0 %v2248
    %v2250 = vpop.f32.mrb[0].mxu0
    %v2251 = vadd.f32 %v2107, %v2250
    %v2252 = vpop.f32.mrb[0].mxu0
    %2253 = vmatprep.mubr.f32.mxu0 0.0
    %v2254 = vand.u32 %v1561, 4294901760
    %v2255 = vsub.f32 %v1561, %v2254
    %v2256 = vand.u32 %v2255, 4294901760
    %2257 = vmatmul.mubr.f32.gmra.mrb[0].mxu0 %v2256
    %v2258 = vpop.f32.mrb[0].mxu0
    %v2259 = vadd.f32 %v2114, %v2258
    %v2260 = vpop.f32.mrb[0].mxu0
    %2261 = vdwg.mxu0
    %2262 = vmatprep.subr.mxu0 0.0
    %v2263 = vand.u32 %v1538, 4294901760
    %v2264 = vsub.f32 %v1538, %v2263
    %v2265 = vand.u32 %v2264, 4294901760
    %2266 = vmatpush1.msra.mxu0 %v2265
    %2267 = vmatprep.subr.mxu0 0.0
    %v2268 = vand.u32 %v1539, 4294901760
    %v2269 = vsub.f32 %v1539, %v2268
    %v2270 = vand.u32 %v2269, 4294901760
    %2271 = vmatpush1.msra.mxu0 %v2270
    %2272 = vmatprep.subr.mxu0 0.0
    %v2273 = vand.u32 %v1540, 4294901760
    %v2274 = vsub.f32 %v1540, %v2273
    %v2275 = vand.u32 %v2274, 4294901760
    %2276 = vmatpush1.msra.mxu0 %v2275
    %2277 = vmatprep.subr.mxu0 0.0
    %v2278 = vand.u32 %v1541, 4294901760
    %v2279 = vsub.f32 %v1541, %v2278
    %v2280 = vand.u32 %v2279, 4294901760
    %2281 = vmatpush1.msra.mxu0 %v2280
    %2282 = vmatprep.subr.mxu0 0.0
    %v2283 = vand.u32 %v1542, 4294901760
    %v2284 = vsub.f32 %v1542, %v2283
    %v2285 = vand.u32 %v2284, 4294901760
    %2286 = vmatpush1.msra.mxu0 %v2285
    %2287 = vmatprep.subr.mxu0 0.0
    %v2288 = vand.u32 %v1543, 4294901760
    %v2289 = vsub.f32 %v1543, %v2288
    %v2290 = vand.u32 %v2289, 4294901760
    %2291 = vmatpush1.msra.mxu0 %v2290
    %2292 = vmatprep.subr.mxu0 0.0
    %v2293 = vand.u32 %v1544, 4294901760
    %v2294 = vsub.f32 %v1544, %v2293
    %v2295 = vand.u32 %v2294, 4294901760
    %2296 = vmatpush1.msra.mxu0 %v2295
    %2297 = vmatprep.subr.mxu0 0.0
    %v2298 = vand.u32 %v1545, 4294901760
    %v2299 = vsub.f32 %v1545, %v2298
    %v2300 = vand.u32 %v2299, 4294901760
    %2301 = vmatpush1.msra.mxu0 %v2300
    %2302 = vmatprep.subr.mxu0 0.0
    %v2303 = vand.u32 %v1546, 4294901760
    %v2304 = vsub.f32 %v1546, %v2303
    %v2305 = vand.u32 %v2304, 4294901760
    %2306 = vmatpush1.msra.mxu0 %v2305
    %2307 = vmatprep.subr.mxu0 0.0
    %v2308 = vand.u32 %v1547, 4294901760
    %v2309 = vsub.f32 %v1547, %v2308
    %v2310 = vand.u32 %v2309, 4294901760
    %2311 = vmatpush1.msra.mxu0 %v2310
    %2312 = vmatprep.subr.mxu0 0.0
    %v2313 = vand.u32 %v1548, 4294901760
    %v2314 = vsub.f32 %v1548, %v2313
    %v2315 = vand.u32 %v2314, 4294901760
    %2316 = vmatpush1.msra.mxu0 %v2315
    %2317 = vmatprep.subr.mxu0 0.0
    %v2318 = vand.u32 %v1549, 4294901760
    %v2319 = vsub.f32 %v1549, %v2318
    %v2320 = vand.u32 %v2319, 4294901760
    %2321 = vmatpush1.msra.mxu0 %v2320
    %2322 = vmatprep.subr.mxu0 0.0
    %v2323 = vand.u32 %v1550, 4294901760
    %v2324 = vsub.f32 %v1550, %v2323
    %v2325 = vand.u32 %v2324, 4294901760
    %2326 = vmatpush1.msra.mxu0 %v2325
    %2327 = vmatprep.subr.mxu0 0.0
    %v2328 = vand.u32 %v1551, 4294901760
    %v2329 = vsub.f32 %v1551, %v2328
    %v2330 = vand.u32 %v2329, 4294901760
    %2331 = vmatpush1.msra.mxu0 %v2330
    %2332 = vmatprep.subr.mxu0 0.0
    %v2333 = vand.u32 %v1552, 4294901760
    %v2334 = vsub.f32 %v1552, %v2333
    %v2335 = vand.u32 %v2334, 4294901760
    %2336 = vmatpush1.msra.mxu0 %v2335
    %2337 = vmatprep.subr.mxu0 0.0
    %v2338 = vand.u32 %v1553, 4294901760
    %v2339 = vsub.f32 %v1553, %v2338
    %v2340 = vand.u32 %v2339, 4294901760
    %2341 = vmatpush1.msra.mxu0 %v2340
    %2342 = vmatprep.subr.mxu0 0.0
    %2343 = vmatpush1.msra.mxu0 0.0
    %2344 = vmatprep.subr.mxu0 0.0
    %2345 = vmatpush1.msra.mxu0 0.0
    %2346 = vmatprep.subr.mxu0 0.0
    %2347 = vmatpush1.msra.mxu0 0.0
    %2348 = vmatprep.subr.mxu0 0.0
    %2349 = vmatpush1.msra.mxu0 0.0
    %2350 = vmatprep.subr.mxu0 0.0
    %2351 = vmatpush1.msra.mxu0 0.0
    %2352 = vmatprep.subr.mxu0 0.0
    %2353 = vmatpush1.msra.mxu0 0.0
    %2354 = vmatprep.subr.mxu0 0.0
    %2355 = vmatpush1.msra.mxu0 0.0
    %2356 = vmatprep.subr.mxu0 0.0
    %2357 = vmatpush1.msra.mxu0 0.0
    %2358 = vmatprep.subr.mxu0 0.0
    %2359 = vmatpush1.msra.mxu0 0.0
    %2360 = vmatprep.subr.mxu0 0.0
    %2361 = vmatpush1.msra.mxu0 0.0
    %2362 = vmatprep.subr.mxu0 0.0
    %2363 = vmatpush1.msra.mxu0 0.0
    %2364 = vmatprep.subr.mxu0 0.0
    %2365 = vmatpush1.msra.mxu0 0.0
    %2366 = vmatprep.subr.mxu0 0.0
    %2367 = vmatpush1.msra.mxu0 0.0
    %2368 = vmatprep.subr.mxu0 0.0
    %2369 = vmatpush1.msra.mxu0 0.0
    %2370 = vmatprep.subr.mxu0 0.0
    %2371 = vmatpush1.msra.mxu0 0.0
    %2372 = vmatprep.subr.mxu0 0.0
    %2373 = vmatpush1.msra.mxu0 0.0
    %2374 = vmatprep.mubr.f32.mxu0 0.0
    %v2375 = vand.u32 %v1554, 4294901760
    %2376 = vmatmul.mubr.f32.gmra.mrb[0].mxu0 %v2375
    %v2377 = vpop.f32.mrb[0].mxu0
    %v2378 = vadd.f32 %v2203, %v2377
    %v2379 = vpop.f32.mrb[0].mxu0
    %2380 = vmatprep.mubr.f32.mxu0 0.0
    %v2381 = vand.u32 %v1555, 4294901760
    %2382 = vmatmul.mubr.f32.gmra.mrb[0].mxu0 %v2381
    %v2383 = vpop.f32.mrb[0].mxu0
    %v2384 = vadd.f32 %v2211, %v2383
    %v2385 = vpop.f32.mrb[0].mxu0
    %2386 = vmatprep.mubr.f32.mxu0 0.0
    %v2387 = vand.u32 %v1556, 4294901760
    %2388 = vmatmul.mubr.f32.gmra.mrb[0].mxu0 %v2387
    %v2389 = vpop.f32.mrb[0].mxu0
    %v2390 = vadd.f32 %v2219, %v2389
    %v2391 = vpop.f32.mrb[0].mxu0
    %2392 = vmatprep.mubr.f32.mxu0 0.0
    %v2393 = vand.u32 %v1557, 4294901760
    %2394 = vmatmul.mubr.f32.gmra.mrb[0].mxu0 %v2393
    %v2395 = vpop.f32.mrb[0].mxu0
    %v2396 = vadd.f32 %v2227, %v2395
    %v2397 = vpop.f32.mrb[0].mxu0
    %2398 = vmatprep.mubr.f32.mxu0 0.0
    %v2399 = vand.u32 %v1558, 4294901760
    %2400 = vmatmul.mubr.f32.gmra.mrb[0].mxu0 %v2399
    %v2401 = vpop.f32.mrb[0].mxu0
    %v2402 = vadd.f32 %v2235, %v2401
    %v2403 = vpop.f32.mrb[0].mxu0
    %2404 = vmatprep.mubr.f32.mxu0 0.0
    %v2405 = vand.u32 %v1559, 4294901760
    %2406 = vmatmul.mubr.f32.gmra.mrb[0].mxu0 %v2405
    %v2407 = vpop.f32.mrb[0].mxu0
    %v2408 = vadd.f32 %v2243, %v2407
    %v2409 = vpop.f32.mrb[0].mxu0
    %2410 = vmatprep.mubr.f32.mxu0 0.0
    %v2411 = vand.u32 %v1560, 4294901760
    %2412 = vmatmul.mubr.f32.gmra.mrb[0].mxu0 %v2411
    %v2413 = vpop.f32.mrb[0].mxu0
    %v2414 = vadd.f32 %v2251, %v2413
    %v2415 = vpop.f32.mrb[0].mxu0
    %2416 = vmatprep.mubr.f32.mxu0 0.0
    %v2417 = vand.u32 %v1561, 4294901760
    %2418 = vmatmul.mubr.f32.gmra.mrb[0].mxu0 %v2417
    %v2419 = vpop.f32.mrb[0].mxu0
    %v2420 = vadd.f32 %v2259, %v2419
    %v2421 = vpop.f32.mrb[0].mxu0
    %2422 = vdwg.mxu0
    %2423 = vmatprep.subr.mxu0 0.0
    %v2424 = vand.u32 %v1538, 4294901760
    %2425 = vmatpush1.msra.mxu0 %v2424
    %2426 = vmatprep.subr.mxu0 0.0
    %v2427 = vand.u32 %v1539, 4294901760
    %2428 = vmatpush1.msra.mxu0 %v2427
    %2429 = vmatprep.subr.mxu0 0.0
    %v2430 = vand.u32 %v1540, 4294901760
    %2431 = vmatpush1.msra.mxu0 %v2430
    %2432 = vmatprep.subr.mxu0 0.0
    %v2433 = vand.u32 %v1541, 4294901760
    %2434 = vmatpush1.msra.mxu0 %v2433
    %2435 = vmatprep.subr.mxu0 0.0
    %v2436 = vand.u32 %v1542, 4294901760
    %2437 = vmatpush1.msra.mxu0 %v2436
    %2438 = vmatprep.subr.mxu0 0.0
    %v2439 = vand.u32 %v1543, 4294901760
    %2440 = vmatpush1.msra.mxu0 %v2439
    %2441 = vmatprep.subr.mxu0 0.0
    %v2442 = vand.u32 %v1544, 4294901760
    %2443 = vmatpush1.msra.mxu0 %v2442
    %2444 = vmatprep.subr.mxu0 0.0
    %v2445 = vand.u32 %v1545, 4294901760
    %2446 = vmatpush1.msra.mxu0 %v2445
    %2447 = vmatprep.subr.mxu0 0.0
    %v2448 = vand.u32 %v1546, 4294901760
    %2449 = vmatpush1.msra.mxu0 %v2448
    %2450 = vmatprep.subr.mxu0 0.0
    %v2451 = vand.u32 %v1547, 4294901760
    %2452 = vmatpush1.msra.mxu0 %v2451
    %2453 = vmatprep.subr.mxu0 0.0
    %v2454 = vand.u32 %v1548, 4294901760
    %2455 = vmatpush1.msra.mxu0 %v2454
    %2456 = vmatprep.subr.mxu0 0.0
    %v2457 = vand.u32 %v1549, 4294901760
    %2458 = vmatpush1.msra.mxu0 %v2457
    %2459 = vmatprep.subr.mxu0 0.0
    %v2460 = vand.u32 %v1550, 4294901760
    %2461 = vmatpush1.msra.mxu0 %v2460
    %2462 = vmatprep.subr.mxu0 0.0
    %v2463 = vand.u32 %v1551, 4294901760
    %2464 = vmatpush1.msra.mxu0 %v2463
    %2465 = vmatprep.subr.mxu0 0.0
    %v2466 = vand.u32 %v1552, 4294901760
    %2467 = vmatpush1.msra.mxu0 %v2466
    %2468 = vmatprep.subr.mxu0 0.0
    %v2469 = vand.u32 %v1553, 4294901760
    %2470 = vmatpush1.msra.mxu0 %v2469
    %2471 = vmatprep.subr.mxu0 0.0
    %2472 = vmatpush1.msra.mxu0 0.0
    %2473 = vmatprep.subr.mxu0 0.0
    %2474 = vmatpush1.msra.mxu0 0.0
    %2475 = vmatprep.subr.mxu0 0.0
    %2476 = vmatpush1.msra.mxu0 0.0
    %2477 = vmatprep.subr.mxu0 0.0
    %2478 = vmatpush1.msra.mxu0 0.0
    %2479 = vmatprep.subr.mxu0 0.0
    %2480 = vmatpush1.msra.mxu0 0.0
    %2481 = vmatprep.subr.mxu0 0.0
    %2482 = vmatpush1.msra.mxu0 0.0
    %2483 = vmatprep.subr.mxu0 0.0
    %2484 = vmatpush1.msra.mxu0 0.0
    %2485 = vmatprep.subr.mxu0 0.0
    %2486 = vmatpush1.msra.mxu0 0.0
    %2487 = vmatprep.subr.mxu0 0.0
    %2488 = vmatpush1.msra.mxu0 0.0
    %2489 = vmatprep.subr.mxu0 0.0
    %2490 = vmatpush1.msra.mxu0 0.0
    %2491 = vmatprep.subr.mxu0 0.0
    %2492 = vmatpush1.msra.mxu0 0.0
    %2493 = vmatprep.subr.mxu0 0.0
    %2494 = vmatpush1.msra.mxu0 0.0
    %2495 = vmatprep.subr.mxu0 0.0
    %2496 = vmatpush1.msra.mxu0 0.0
    %2497 = vmatprep.subr.mxu0 0.0
    %2498 = vmatpush1.msra.mxu0 0.0
    %2499 = vmatprep.subr.mxu0 0.0
    %2500 = vmatpush1.msra.mxu0 0.0
    %2501 = vmatprep.subr.mxu0 0.0
    %2502 = vmatpush1.msra.mxu0 0.0
    %2503 = vmatprep.mubr.f32.mxu0 0.0
    %v2504 = vand.u32 %v1554, 4294901760
    %2505 = vmatmul.mubr.f32.gmra.mrb[0].mxu0 %v2504
    %v2506 = vpop.f32.mrb[0].mxu0
    %v2507 = vadd.f32 %v2378, %v2506
    %v2508 = vpop.f32.mrb[0].mxu0
    %2509 = vmatprep.mubr.f32.mxu0 0.0
    %v2510 = vand.u32 %v1555, 4294901760
    %2511 = vmatmul.mubr.f32.gmra.mrb[0].mxu0 %v2510
    %v2512 = vpop.f32.mrb[0].mxu0
    %v2513 = vadd.f32 %v2384, %v2512
    %v2514 = vpop.f32.mrb[0].mxu0
    %2515 = vmatprep.mubr.f32.mxu0 0.0
    %v2516 = vand.u32 %v1556, 4294901760
    %2517 = vmatmul.mubr.f32.gmra.mrb[0].mxu0 %v2516
    %v2518 = vpop.f32.mrb[0].mxu0
    %v2519 = vadd.f32 %v2390, %v2518
    %v2520 = vpop.f32.mrb[0].mxu0
    %2521 = vmatprep.mubr.f32.mxu0 0.0
    %v2522 = vand.u32 %v1557, 4294901760
    %2523 = vmatmul.mubr.f32.gmra.mrb[0].mxu0 %v2522
    %v2524 = vpop.f32.mrb[0].mxu0
    %v2525 = vadd.f32 %v2396, %v2524
    %v2526 = vpop.f32.mrb[0].mxu0
    %2527 = vmatprep.mubr.f32.mxu0 0.0
    %v2528 = vand.u32 %v1558, 4294901760
    %2529 = vmatmul.mubr.f32.gmra.mrb[0].mxu0 %v2528
    %v2530 = vpop.f32.mrb[0].mxu0
    %v2531 = vadd.f32 %v2402, %v2530
    %v2532 = vpop.f32.mrb[0].mxu0
    %2533 = vmatprep.mubr.f32.mxu0 0.0
    %v2534 = vand.u32 %v1559, 4294901760
    %2535 = vmatmul.mubr.f32.gmra.mrb[0].mxu0 %v2534
    %v2536 = vpop.f32.mrb[0].mxu0
    %v2537 = vadd.f32 %v2408, %v2536
    %v2538 = vpop.f32.mrb[0].mxu0
    %2539 = vmatprep.mubr.f32.mxu0 0.0
    %v2540 = vand.u32 %v1560, 4294901760
    %2541 = vmatmul.mubr.f32.gmra.mrb[0].mxu0 %v2540
    %v2542 = vpop.f32.mrb[0].mxu0
    %v2543 = vadd.f32 %v2414, %v2542
    %v2544 = vpop.f32.mrb[0].mxu0
    %2545 = vmatprep.mubr.f32.mxu0 0.0
    %v2546 = vand.u32 %v1561, 4294901760
    %2547 = vmatmul.mubr.f32.gmra.mrb[0].mxu0 %v2546
    %v2548 = vpop.f32.mrb[0].mxu0
    %v2549 = vadd.f32 %v2420, %v2548
    %v2550 = vpop.f32.mrb[0].mxu0
    %2551 = vdwg.mxu0
    %v2552 = vmax.f32 %v2507, 0.0
    %v2553 = vmax.f32 %v2513, 0.0
    %v2554 = vmax.f32 %v2519, 0.0
    %v2555 = vmax.f32 %v2525, 0.0
    %v2556 = vmax.f32 %v2531, 0.0
    %v2557 = vmax.f32 %v2537, 0.0
    %v2558 = vmax.f32 %v2543, 0.0
    %v2559 = vmax.f32 %v2549, 0.0
    %v2560 = vld [vmem:[%s5] sm:$0xff]
    %v2561 = vld [vmem:[%s6] sm:$0xff]
    %2563 = vset.pattern.permute.xlu0 0
    %2564 = vperm.xlu0 %2563, %v2561
    %v2565 = vpop.permute.xlu0 %2564
    %vm2567 = vcmask 523264
    %v2569 = vsel %vm2567, %v2560, 0
    %2571 = vmatprep.subr.mxu0 0.0
    %v2572 = vand.u32 %v2552, 4294901760
    %2573 = vmatpush1.msra.mxu0 %v2572
    %2574 = vmatprep.subr.mxu0 0.0
    %v2575 = vand.u32 %v2553, 4294901760
    %2576 = vmatpush1.msra.mxu0 %v2575
    %2577 = vmatprep.subr.mxu0 0.0
    %v2578 = vand.u32 %v2554, 4294901760
    %2579 = vmatpush1.msra.mxu0 %v2578
    %2580 = vmatprep.subr.mxu0 0.0
    %v2581 = vand.u32 %v2555, 4294901760
    %2582 = vmatpush1.msra.mxu0 %v2581
    %2583 = vmatprep.subr.mxu0 0.0
    %v2584 = vand.u32 %v2556, 4294901760
    %2585 = vmatpush1.msra.mxu0 %v2584
    %2586 = vmatprep.subr.mxu0 0.0
    %v2587 = vand.u32 %v2557, 4294901760
    %2588 = vmatpush1.msra.mxu0 %v2587
    %2589 = vmatprep.subr.mxu0 0.0
    %v2590 = vand.u32 %v2558, 4294901760
    %2591 = vmatpush1.msra.mxu0 %v2590
    %2592 = vmatprep.subr.mxu0 0.0
    %v2593 = vand.u32 %v2559, 4294901760
    %2594 = vmatpush1.msra.mxu0 %v2593
    %2595 = vmatprep.subr.mxu0 0.0
    %2596 = vmatpush1.msra.mxu0 0.0
    %2597 = vmatprep.subr.mxu0 0.0
    %2598 = vmatpush1.msra.mxu0 0.0
    %2599 = vmatprep.subr.mxu0 0.0
    %2600 = vmatpush1.msra.mxu0 0.0
    %2601 = vmatprep.subr.mxu0 0.0
    %2602 = vmatpush1.msra.mxu0 0.0
    %2603 = vmatprep.subr.mxu0 0.0
    %2604 = vmatpush1.msra.mxu0 0.0
    %2605 = vmatprep.subr.mxu0 0.0
    %2606 = vmatpush1.msra.mxu0 0.0
    %2607 = vmatprep.subr.mxu0 0.0
    %2608 = vmatpush1.msra.mxu0 0.0
    %2609 = vmatprep.subr.mxu0 0.0
    %2610 = vmatpush1.msra.mxu0 0.0
    %2611 = vmatprep.subr.mxu0 0.0
    %2612 = vmatpush1.msra.mxu0 0.0
    %2613 = vmatprep.subr.mxu0 0.0
    %2614 = vmatpush1.msra.mxu0 0.0
    %2615 = vmatprep.subr.mxu0 0.0
    %2616 = vmatpush1.msra.mxu0 0.0
    %2617 = vmatprep.subr.mxu0 0.0
    %2618 = vmatpush1.msra.mxu0 0.0
    %2619 = vmatprep.subr.mxu0 0.0
    %2620 = vmatpush1.msra.mxu0 0.0
    %2621 = vmatprep.subr.mxu0 0.0
    %2622 = vmatpush1.msra.mxu0 0.0
    %2623 = vmatprep.subr.mxu0 0.0
    %2624 = vmatpush1.msra.mxu0 0.0
    %2625 = vmatprep.subr.mxu0 0.0
    %2626 = vmatpush1.msra.mxu0 0.0
    %2627 = vmatprep.subr.mxu0 0.0
    %2628 = vmatpush1.msra.mxu0 0.0
    %2629 = vmatprep.subr.mxu0 0.0
    %2630 = vmatpush1.msra.mxu0 0.0
    %2631 = vmatprep.subr.mxu0 0.0
    %2632 = vmatpush1.msra.mxu0 0.0
    %2633 = vmatprep.subr.mxu0 0.0
    %2634 = vmatpush1.msra.mxu0 0.0
    %2635 = vmatprep.subr.mxu0 0.0
    %2636 = vmatpush1.msra.mxu0 0.0
    %2637 = vmatprep.subr.mxu0 0.0
    %2638 = vmatpush1.msra.mxu0 0.0
    %2639 = vmatprep.subr.mxu0 0.0
    %2640 = vmatpush1.msra.mxu0 0.0
    %2641 = vmatprep.subr.mxu0 0.0
    %2642 = vmatpush1.msra.mxu0 0.0
    %2643 = vmatprep.mubr.f32.mxu0 0.0
    %v2644 = vand.u32 %v2569, 4294901760
    %v2645 = vsub.f32 %v2569, %v2644
    %v2646 = vand.u32 %v2645, 4294901760
    %v2647 = vsub.f32 %v2645, %v2646
    %v2648 = vand.u32 %v2647, 4294901760
    %2649 = vmatmul.mubr.f32.gmra.mrb[0].mxu0 %v2648
    %v2650 = vpop.f32.mrb[0].mxu0
    %v2651 = vadd.f32 %v2565, %v2650
    %v2652 = vpop.f32.mrb[0].mxu0
    %2653 = vdwg.mxu0
    %2654 = vmatprep.subr.mxu0 0.0
    %v2655 = vand.u32 %v2552, 4294901760
    %v2656 = vsub.f32 %v2552, %v2655
    %v2657 = vand.u32 %v2656, 4294901760
    %v2658 = vsub.f32 %v2656, %v2657
    %v2659 = vand.u32 %v2658, 4294901760
    %2660 = vmatpush1.msra.mxu0 %v2659
    %2661 = vmatprep.subr.mxu0 0.0
    %v2662 = vand.u32 %v2553, 4294901760
    %v2663 = vsub.f32 %v2553, %v2662
    %v2664 = vand.u32 %v2663, 4294901760
    %v2665 = vsub.f32 %v2663, %v2664
    %v2666 = vand.u32 %v2665, 4294901760
    %2667 = vmatpush1.msra.mxu0 %v2666
    %2668 = vmatprep.subr.mxu0 0.0
    %v2669 = vand.u32 %v2554, 4294901760
    %v2670 = vsub.f32 %v2554, %v2669
    %v2671 = vand.u32 %v2670, 4294901760
    %v2672 = vsub.f32 %v2670, %v2671
    %v2673 = vand.u32 %v2672, 4294901760
    %2674 = vmatpush1.msra.mxu0 %v2673
    %2675 = vmatprep.subr.mxu0 0.0
    %v2676 = vand.u32 %v2555, 4294901760
    %v2677 = vsub.f32 %v2555, %v2676
    %v2678 = vand.u32 %v2677, 4294901760
    %v2679 = vsub.f32 %v2677, %v2678
    %v2680 = vand.u32 %v2679, 4294901760
    %2681 = vmatpush1.msra.mxu0 %v2680
    %2682 = vmatprep.subr.mxu0 0.0
    %v2683 = vand.u32 %v2556, 4294901760
    %v2684 = vsub.f32 %v2556, %v2683
    %v2685 = vand.u32 %v2684, 4294901760
    %v2686 = vsub.f32 %v2684, %v2685
    %v2687 = vand.u32 %v2686, 4294901760
    %2688 = vmatpush1.msra.mxu0 %v2687
    %2689 = vmatprep.subr.mxu0 0.0
    %v2690 = vand.u32 %v2557, 4294901760
    %v2691 = vsub.f32 %v2557, %v2690
    %v2692 = vand.u32 %v2691, 4294901760
    %v2693 = vsub.f32 %v2691, %v2692
    %v2694 = vand.u32 %v2693, 4294901760
    %2695 = vmatpush1.msra.mxu0 %v2694
    %2696 = vmatprep.subr.mxu0 0.0
    %v2697 = vand.u32 %v2558, 4294901760
    %v2698 = vsub.f32 %v2558, %v2697
    %v2699 = vand.u32 %v2698, 4294901760
    %v2700 = vsub.f32 %v2698, %v2699
    %v2701 = vand.u32 %v2700, 4294901760
    %2702 = vmatpush1.msra.mxu0 %v2701
    %2703 = vmatprep.subr.mxu0 0.0
    %v2704 = vand.u32 %v2559, 4294901760
    %v2705 = vsub.f32 %v2559, %v2704
    %v2706 = vand.u32 %v2705, 4294901760
    %v2707 = vsub.f32 %v2705, %v2706
    %v2708 = vand.u32 %v2707, 4294901760
    %2709 = vmatpush1.msra.mxu0 %v2708
    %2710 = vmatprep.subr.mxu0 0.0
    %2711 = vmatpush1.msra.mxu0 0.0
    %2712 = vmatprep.subr.mxu0 0.0
    %2713 = vmatpush1.msra.mxu0 0.0
    %2714 = vmatprep.subr.mxu0 0.0
    %2715 = vmatpush1.msra.mxu0 0.0
    %2716 = vmatprep.subr.mxu0 0.0
    %2717 = vmatpush1.msra.mxu0 0.0
    %2718 = vmatprep.subr.mxu0 0.0
    %2719 = vmatpush1.msra.mxu0 0.0
    %2720 = vmatprep.subr.mxu0 0.0
    %2721 = vmatpush1.msra.mxu0 0.0
    %2722 = vmatprep.subr.mxu0 0.0
    %2723 = vmatpush1.msra.mxu0 0.0
    %2724 = vmatprep.subr.mxu0 0.0
    %2725 = vmatpush1.msra.mxu0 0.0
    %2726 = vmatprep.subr.mxu0 0.0
    %2727 = vmatpush1.msra.mxu0 0.0
    %2728 = vmatprep.subr.mxu0 0.0
    %2729 = vmatpush1.msra.mxu0 0.0
    %2730 = vmatprep.subr.mxu0 0.0
    %2731 = vmatpush1.msra.mxu0 0.0
    %2732 = vmatprep.subr.mxu0 0.0
    %2733 = vmatpush1.msra.mxu0 0.0
    %2734 = vmatprep.subr.mxu0 0.0
    %2735 = vmatpush1.msra.mxu0 0.0
    %2736 = vmatprep.subr.mxu0 0.0
    %2737 = vmatpush1.msra.mxu0 0.0
    %2738 = vmatprep.subr.mxu0 0.0
    %2739 = vmatpush1.msra.mxu0 0.0
    %2740 = vmatprep.subr.mxu0 0.0
    %2741 = vmatpush1.msra.mxu0 0.0
    %2742 = vmatprep.subr.mxu0 0.0
    %2743 = vmatpush1.msra.mxu0 0.0
    %2744 = vmatprep.subr.mxu0 0.0
    %2745 = vmatpush1.msra.mxu0 0.0
    %2746 = vmatprep.subr.mxu0 0.0
    %2747 = vmatpush1.msra.mxu0 0.0
    %2748 = vmatprep.subr.mxu0 0.0
    %2749 = vmatpush1.msra.mxu0 0.0
    %2750 = vmatprep.subr.mxu0 0.0
    %2751 = vmatpush1.msra.mxu0 0.0
    %2752 = vmatprep.subr.mxu0 0.0
    %2753 = vmatpush1.msra.mxu0 0.0
    %2754 = vmatprep.subr.mxu0 0.0
    %2755 = vmatpush1.msra.mxu0 0.0
    %2756 = vmatprep.subr.mxu0 0.0
    %2757 = vmatpush1.msra.mxu0 0.0
    %2758 = vmatprep.mubr.f32.mxu0 0.0
    %v2759 = vand.u32 %v2569, 4294901760
    %2760 = vmatmul.mubr.f32.gmra.mrb[0].mxu0 %v2759
    %v2761 = vpop.f32.mrb[0].mxu0
    %v2762 = vadd.f32 %v2651, %v2761
    %v2763 = vpop.f32.mrb[0].mxu0
    %2764 = vdwg.mxu0
    %2765 = vmatprep.subr.mxu0 0.0
    %v2766 = vand.u32 %v2552, 4294901760
    %v2767 = vsub.f32 %v2552, %v2766
    %2768 = vmatpush1.msra.mxu0 %v2767
    %2769 = vmatprep.subr.mxu0 0.0
    %v2770 = vand.u32 %v2553, 4294901760
    %v2771 = vsub.f32 %v2553, %v2770
    %2772 = vmatpush1.msra.mxu0 %v2771
    %2773 = vmatprep.subr.mxu0 0.0
    %v2774 = vand.u32 %v2554, 4294901760
    %v2775 = vsub.f32 %v2554, %v2774
    %2776 = vmatpush1.msra.mxu0 %v2775
    %2777 = vmatprep.subr.mxu0 0.0
    %v2778 = vand.u32 %v2555, 4294901760
    %v2779 = vsub.f32 %v2555, %v2778
    %2780 = vmatpush1.msra.mxu0 %v2779
    %2781 = vmatprep.subr.mxu0 0.0
    %v2782 = vand.u32 %v2556, 4294901760
    %v2783 = vsub.f32 %v2556, %v2782
    %2784 = vmatpush1.msra.mxu0 %v2783
    %2785 = vmatprep.subr.mxu0 0.0
    %v2786 = vand.u32 %v2557, 4294901760
    %v2787 = vsub.f32 %v2557, %v2786
    %2788 = vmatpush1.msra.mxu0 %v2787
    %2789 = vmatprep.subr.mxu0 0.0
    %v2790 = vand.u32 %v2558, 4294901760
    %v2791 = vsub.f32 %v2558, %v2790
    %2792 = vmatpush1.msra.mxu0 %v2791
    %2793 = vmatprep.subr.mxu0 0.0
    %v2794 = vand.u32 %v2559, 4294901760
    %v2795 = vsub.f32 %v2559, %v2794
    %2796 = vmatpush1.msra.mxu0 %v2795
    %2797 = vmatprep.subr.mxu0 0.0
    %2798 = vmatpush1.msra.mxu0 0.0
    %2799 = vmatprep.subr.mxu0 0.0
    %2800 = vmatpush1.msra.mxu0 0.0
    %2801 = vmatprep.subr.mxu0 0.0
    %2802 = vmatpush1.msra.mxu0 0.0
    %2803 = vmatprep.subr.mxu0 0.0
    %2804 = vmatpush1.msra.mxu0 0.0
    %2805 = vmatprep.subr.mxu0 0.0
    %2806 = vmatpush1.msra.mxu0 0.0
    %2807 = vmatprep.subr.mxu0 0.0
    %2808 = vmatpush1.msra.mxu0 0.0
    %2809 = vmatprep.subr.mxu0 0.0
    %2810 = vmatpush1.msra.mxu0 0.0
    %2811 = vmatprep.subr.mxu0 0.0
    %2812 = vmatpush1.msra.mxu0 0.0
    %2813 = vmatprep.subr.mxu0 0.0
    %2814 = vmatpush1.msra.mxu0 0.0
    %2815 = vmatprep.subr.mxu0 0.0
    %2816 = vmatpush1.msra.mxu0 0.0
    %2817 = vmatprep.subr.mxu0 0.0
    %2818 = vmatpush1.msra.mxu0 0.0
    %2819 = vmatprep.subr.mxu0 0.0
    %2820 = vmatpush1.msra.mxu0 0.0
    %2821 = vmatprep.subr.mxu0 0.0
    %2822 = vmatpush1.msra.mxu0 0.0
    %2823 = vmatprep.subr.mxu0 0.0
    %2824 = vmatpush1.msra.mxu0 0.0
    %2825 = vmatprep.subr.mxu0 0.0
    %2826 = vmatpush1.msra.mxu0 0.0
    %2827 = vmatprep.subr.mxu0 0.0
    %2828 = vmatpush1.msra.mxu0 0.0
    %2829 = vmatprep.subr.mxu0 0.0
    %2830 = vmatpush1.msra.mxu0 0.0
    %2831 = vmatprep.subr.mxu0 0.0
    %2832 = vmatpush1.msra.mxu0 0.0
    %2833 = vmatprep.subr.mxu0 0.0
    %2834 = vmatpush1.msra.mxu0 0.0
    %2835 = vmatprep.subr.mxu0 0.0
    %2836 = vmatpush1.msra.mxu0 0.0
    %2837 = vmatprep.subr.mxu0 0.0
    %2838 = vmatpush1.msra.mxu0 0.0
    %2839 = vmatprep.subr.mxu0 0.0
    %2840 = vmatpush1.msra.mxu0 0.0
    %2841 = vmatprep.subr.mxu0 0.0
    %2842 = vmatpush1.msra.mxu0 0.0
    %2843 = vmatprep.subr.mxu0 0.0
    %2844 = vmatpush1.msra.mxu0 0.0
    %2845 = vmatprep.mubr.f32.mxu0 0.0
    %v2846 = vand.u32 %v2569, 4294901760
    %v2847 = vsub.f32 %v2569, %v2846
    %2848 = vmatmul.mubr.f32.gmra.mrb[0].mxu0 %v2847
    %v2849 = vpop.f32.mrb[0].mxu0
    %v2850 = vadd.f32 %v2762, %v2849
    %v2851 = vpop.f32.mrb[0].mxu0
    %2852 = vdwg.mxu0
    %2853 = vmatprep.subr.mxu0 0.0
    %v2854 = vand.u32 %v2552, 4294901760
    %2855 = vmatpush1.msra.mxu0 %v2854
    %2856 = vmatprep.subr.mxu0 0.0
    %v2857 = vand.u32 %v2553, 4294901760
    %2858 = vmatpush1.msra.mxu0 %v2857
    %2859 = vmatprep.subr.mxu0 0.0
    %v2860 = vand.u32 %v2554, 4294901760
    %2861 = vmatpush1.msra.mxu0 %v2860
    %2862 = vmatprep.subr.mxu0 0.0
    %v2863 = vand.u32 %v2555, 4294901760
    %2864 = vmatpush1.msra.mxu0 %v2863
    %2865 = vmatprep.subr.mxu0 0.0
    %v2866 = vand.u32 %v2556, 4294901760
    %2867 = vmatpush1.msra.mxu0 %v2866
    %2868 = vmatprep.subr.mxu0 0.0
    %v2869 = vand.u32 %v2557, 4294901760
    %2870 = vmatpush1.msra.mxu0 %v2869
    %2871 = vmatprep.subr.mxu0 0.0
    %v2872 = vand.u32 %v2558, 4294901760
    %2873 = vmatpush1.msra.mxu0 %v2872
    %2874 = vmatprep.subr.mxu0 0.0
    %v2875 = vand.u32 %v2559, 4294901760
    %2876 = vmatpush1.msra.mxu0 %v2875
    %2877 = vmatprep.subr.mxu0 0.0
    %2878 = vmatpush1.msra.mxu0 0.0
    %2879 = vmatprep.subr.mxu0 0.0
    %2880 = vmatpush1.msra.mxu0 0.0
    %2881 = vmatprep.subr.mxu0 0.0
    %2882 = vmatpush1.msra.mxu0 0.0
    %2883 = vmatprep.subr.mxu0 0.0
    %2884 = vmatpush1.msra.mxu0 0.0
    %2885 = vmatprep.subr.mxu0 0.0
    %2886 = vmatpush1.msra.mxu0 0.0
    %2887 = vmatprep.subr.mxu0 0.0
    %2888 = vmatpush1.msra.mxu0 0.0
    %2889 = vmatprep.subr.mxu0 0.0
    %2890 = vmatpush1.msra.mxu0 0.0
    %2891 = vmatprep.subr.mxu0 0.0
    %2892 = vmatpush1.msra.mxu0 0.0
    %2893 = vmatprep.subr.mxu0 0.0
    %2894 = vmatpush1.msra.mxu0 0.0
    %2895 = vmatprep.subr.mxu0 0.0
    %2896 = vmatpush1.msra.mxu0 0.0
    %2897 = vmatprep.subr.mxu0 0.0
    %2898 = vmatpush1.msra.mxu0 0.0
    %2899 = vmatprep.subr.mxu0 0.0
    %2900 = vmatpush1.msra.mxu0 0.0
    %2901 = vmatprep.subr.mxu0 0.0
    %2902 = vmatpush1.msra.mxu0 0.0
    %2903 = vmatprep.subr.mxu0 0.0
    %2904 = vmatpush1.msra.mxu0 0.0
    %2905 = vmatprep.subr.mxu0 0.0
    %2906 = vmatpush1.msra.mxu0 0.0
    %2907 = vmatprep.subr.mxu0 0.0
    %2908 = vmatpush1.msra.mxu0 0.0
    %2909 = vmatprep.subr.mxu0 0.0
    %2910 = vmatpush1.msra.mxu0 0.0
    %2911 = vmatprep.subr.mxu0 0.0
    %2912 = vmatpush1.msra.mxu0 0.0
    %2913 = vmatprep.subr.mxu0 0.0
    %2914 = vmatpush1.msra.mxu0 0.0
    %2915 = vmatprep.subr.mxu0 0.0
    %2916 = vmatpush1.msra.mxu0 0.0
    %2917 = vmatprep.subr.mxu0 0.0
    %2918 = vmatpush1.msra.mxu0 0.0
    %2919 = vmatprep.subr.mxu0 0.0
    %2920 = vmatpush1.msra.mxu0 0.0
    %2921 = vmatprep.subr.mxu0 0.0
    %2922 = vmatpush1.msra.mxu0 0.0
    %2923 = vmatprep.subr.mxu0 0.0
    %2924 = vmatpush1.msra.mxu0 0.0
    %2925 = vmatprep.mubr.f32.mxu0 0.0
    %v2926 = vand.u32 %v2569, 4294901760
    %v2927 = vsub.f32 %v2569, %v2926
    %v2928 = vand.u32 %v2927, 4294901760
    %2929 = vmatmul.mubr.f32.gmra.mrb[0].mxu0 %v2928
    %v2930 = vpop.f32.mrb[0].mxu0
    %v2931 = vadd.f32 %v2850, %v2930
    %v2932 = vpop.f32.mrb[0].mxu0
    %2933 = vdwg.mxu0
    %2934 = vmatprep.subr.mxu0 0.0
    %v2935 = vand.u32 %v2552, 4294901760
    %v2936 = vsub.f32 %v2552, %v2935
    %v2937 = vand.u32 %v2936, 4294901760
    %2938 = vmatpush1.msra.mxu0 %v2937
    %2939 = vmatprep.subr.mxu0 0.0
    %v2940 = vand.u32 %v2553, 4294901760
    %v2941 = vsub.f32 %v2553, %v2940
    %v2942 = vand.u32 %v2941, 4294901760
    %2943 = vmatpush1.msra.mxu0 %v2942
    %2944 = vmatprep.subr.mxu0 0.0
    %v2945 = vand.u32 %v2554, 4294901760
    %v2946 = vsub.f32 %v2554, %v2945
    %v2947 = vand.u32 %v2946, 4294901760
    %2948 = vmatpush1.msra.mxu0 %v2947
    %2949 = vmatprep.subr.mxu0 0.0
    %v2950 = vand.u32 %v2555, 4294901760
    %v2951 = vsub.f32 %v2555, %v2950
    %v2952 = vand.u32 %v2951, 4294901760
    %2953 = vmatpush1.msra.mxu0 %v2952
    %2954 = vmatprep.subr.mxu0 0.0
    %v2955 = vand.u32 %v2556, 4294901760
    %v2956 = vsub.f32 %v2556, %v2955
    %v2957 = vand.u32 %v2956, 4294901760
    %2958 = vmatpush1.msra.mxu0 %v2957
    %2959 = vmatprep.subr.mxu0 0.0
    %v2960 = vand.u32 %v2557, 4294901760
    %v2961 = vsub.f32 %v2557, %v2960
    %v2962 = vand.u32 %v2961, 4294901760
    %2963 = vmatpush1.msra.mxu0 %v2962
    %2964 = vmatprep.subr.mxu0 0.0
    %v2965 = vand.u32 %v2558, 4294901760
    %v2966 = vsub.f32 %v2558, %v2965
    %v2967 = vand.u32 %v2966, 4294901760
    %2968 = vmatpush1.msra.mxu0 %v2967
    %2969 = vmatprep.subr.mxu0 0.0
    %v2970 = vand.u32 %v2559, 4294901760
    %v2971 = vsub.f32 %v2559, %v2970
    %v2972 = vand.u32 %v2971, 4294901760
    %2973 = vmatpush1.msra.mxu0 %v2972
    %2974 = vmatprep.subr.mxu0 0.0
    %2975 = vmatpush1.msra.mxu0 0.0
    %2976 = vmatprep.subr.mxu0 0.0
    %2977 = vmatpush1.msra.mxu0 0.0
    %2978 = vmatprep.subr.mxu0 0.0
    %2979 = vmatpush1.msra.mxu0 0.0
    %2980 = vmatprep.subr.mxu0 0.0
    %2981 = vmatpush1.msra.mxu0 0.0
    %2982 = vmatprep.subr.mxu0 0.0
    %2983 = vmatpush1.msra.mxu0 0.0
    %2984 = vmatprep.subr.mxu0 0.0
    %2985 = vmatpush1.msra.mxu0 0.0
    %2986 = vmatprep.subr.mxu0 0.0
    %2987 = vmatpush1.msra.mxu0 0.0
    %2988 = vmatprep.subr.mxu0 0.0
    %2989 = vmatpush1.msra.mxu0 0.0
    %2990 = vmatprep.subr.mxu0 0.0
    %2991 = vmatpush1.msra.mxu0 0.0
    %2992 = vmatprep.subr.mxu0 0.0
    %2993 = vmatpush1.msra.mxu0 0.0
    %2994 = vmatprep.subr.mxu0 0.0
    %2995 = vmatpush1.msra.mxu0 0.0
    %2996 = vmatprep.subr.mxu0 0.0
    %2997 = vmatpush1.msra.mxu0 0.0
    %2998 = vmatprep.subr.mxu0 0.0
    %2999 = vmatpush1.msra.mxu0 0.0
    %3000 = vmatprep.subr.mxu0 0.0
    %3001 = vmatpush1.msra.mxu0 0.0
    %3002 = vmatprep.subr.mxu0 0.0
    %3003 = vmatpush1.msra.mxu0 0.0
    %3004 = vmatprep.subr.mxu0 0.0
    %3005 = vmatpush1.msra.mxu0 0.0
    %3006 = vmatprep.subr.mxu0 0.0
    %3007 = vmatpush1.msra.mxu0 0.0
    %3008 = vmatprep.subr.mxu0 0.0
    %3009 = vmatpush1.msra.mxu0 0.0
    %3010 = vmatprep.subr.mxu0 0.0
    %3011 = vmatpush1.msra.mxu0 0.0
    %3012 = vmatprep.subr.mxu0 0.0
    %3013 = vmatpush1.msra.mxu0 0.0
    %3014 = vmatprep.subr.mxu0 0.0
    %3015 = vmatpush1.msra.mxu0 0.0
    %3016 = vmatprep.subr.mxu0 0.0
    %3017 = vmatpush1.msra.mxu0 0.0
    %3018 = vmatprep.subr.mxu0 0.0
    %3019 = vmatpush1.msra.mxu0 0.0
    %3020 = vmatprep.subr.mxu0 0.0
    %3021 = vmatpush1.msra.mxu0 0.0
    %3022 = vmatprep.mubr.f32.mxu0 0.0
    %v3023 = vand.u32 %v2569, 4294901760
    %3024 = vmatmul.mubr.f32.gmra.mrb[0].mxu0 %v3023
    %v3025 = vpop.f32.mrb[0].mxu0
    %v3026 = vadd.f32 %v2931, %v3025
    %v3027 = vpop.f32.mrb[0].mxu0
    %3028 = vdwg.mxu0
    %3029 = vmatprep.subr.mxu0 0.0
    %v3030 = vand.u32 %v2552, 4294901760
    %3031 = vmatpush1.msra.mxu0 %v3030
    %3032 = vmatprep.subr.mxu0 0.0
    %v3033 = vand.u32 %v2553, 4294901760
    %3034 = vmatpush1.msra.mxu0 %v3033
    %3035 = vmatprep.subr.mxu0 0.0
    %v3036 = vand.u32 %v2554, 4294901760
    %3037 = vmatpush1.msra.mxu0 %v3036
    %3038 = vmatprep.subr.mxu0 0.0
    %v3039 = vand.u32 %v2555, 4294901760
    %3040 = vmatpush1.msra.mxu0 %v3039
    %3041 = vmatprep.subr.mxu0 0.0
    %v3042 = vand.u32 %v2556, 4294901760
    %3043 = vmatpush1.msra.mxu0 %v3042
    %3044 = vmatprep.subr.mxu0 0.0
    %v3045 = vand.u32 %v2557, 4294901760
    %3046 = vmatpush1.msra.mxu0 %v3045
    %3047 = vmatprep.subr.mxu0 0.0
    %v3048 = vand.u32 %v2558, 4294901760
    %3049 = vmatpush1.msra.mxu0 %v3048
    %3050 = vmatprep.subr.mxu0 0.0
    %v3051 = vand.u32 %v2559, 4294901760
    %3052 = vmatpush1.msra.mxu0 %v3051
    %3053 = vmatprep.subr.mxu0 0.0
    %3054 = vmatpush1.msra.mxu0 0.0
    %3055 = vmatprep.subr.mxu0 0.0
    %3056 = vmatpush1.msra.mxu0 0.0
    %3057 = vmatprep.subr.mxu0 0.0
    %3058 = vmatpush1.msra.mxu0 0.0
    %3059 = vmatprep.subr.mxu0 0.0
    %3060 = vmatpush1.msra.mxu0 0.0
    %3061 = vmatprep.subr.mxu0 0.0
    %3062 = vmatpush1.msra.mxu0 0.0
    %3063 = vmatprep.subr.mxu0 0.0
    %3064 = vmatpush1.msra.mxu0 0.0
    %3065 = vmatprep.subr.mxu0 0.0
    %3066 = vmatpush1.msra.mxu0 0.0
    %3067 = vmatprep.subr.mxu0 0.0
    %3068 = vmatpush1.msra.mxu0 0.0
    %3069 = vmatprep.subr.mxu0 0.0
    %3070 = vmatpush1.msra.mxu0 0.0
    %3071 = vmatprep.subr.mxu0 0.0
    %3072 = vmatpush1.msra.mxu0 0.0
    %3073 = vmatprep.subr.mxu0 0.0
    %3074 = vmatpush1.msra.mxu0 0.0
    %3075 = vmatprep.subr.mxu0 0.0
    %3076 = vmatpush1.msra.mxu0 0.0
    %3077 = vmatprep.subr.mxu0 0.0
    %3078 = vmatpush1.msra.mxu0 0.0
    %3079 = vmatprep.subr.mxu0 0.0
    %3080 = vmatpush1.msra.mxu0 0.0
    %3081 = vmatprep.subr.mxu0 0.0
    %3082 = vmatpush1.msra.mxu0 0.0
    %3083 = vmatprep.subr.mxu0 0.0
    %3084 = vmatpush1.msra.mxu0 0.0
    %3085 = vmatprep.subr.mxu0 0.0
    %3086 = vmatpush1.msra.mxu0 0.0
    %3087 = vmatprep.subr.mxu0 0.0
    %3088 = vmatpush1.msra.mxu0 0.0
    %3089 = vmatprep.subr.mxu0 0.0
    %3090 = vmatpush1.msra.mxu0 0.0
    %3091 = vmatprep.subr.mxu0 0.0
    %3092 = vmatpush1.msra.mxu0 0.0
    %3093 = vmatprep.subr.mxu0 0.0
    %3094 = vmatpush1.msra.mxu0 0.0
    %3095 = vmatprep.subr.mxu0 0.0
    %3096 = vmatpush1.msra.mxu0 0.0
    %3097 = vmatprep.subr.mxu0 0.0
    %3098 = vmatpush1.msra.mxu0 0.0
    %3099 = vmatprep.subr.mxu0 0.0
    %3100 = vmatpush1.msra.mxu0 0.0
    %3101 = vmatprep.mubr.f32.mxu0 0.0
    %v3102 = vand.u32 %v2569, 4294901760
    %3103 = vmatmul.mubr.f32.gmra.mrb[0].mxu0 %v3102
    %v3104 = vpop.f32.mrb[0].mxu0
    %v3105 = vadd.f32 %v3026, %v3104
    %v3106 = vpop.f32.mrb[0].mxu0
    %3107 = vdwg.mxu0
    %3108 = vst [vmem:[#allocation2] sm:$0xff] %v3105
    // Predicated region
    $region30: #{tpu_custom_call.1} parent=1 // pred_check
      _
    $region31: #{tpu_custom_call.1} parent=1 // pred_check_branch
      %3110 = sbr.rel (0) target = $region33
    $region32: #{tpu_custom_call.1} parent=1 // pred_region
      %s3112 = ssub.s32 128, 128
      %3113 = vsyncadd [#allocation3], %s3112
      %s3115 = sshll.u32 [#allocation2], 4
      %s3116 = int_to_ptr.vmem [resolvable:$true] %s3115
      %3118 = dma.vmem_to_hbm [thread:$0]  %s3116, 128, %s7, [#allocation3]
    $region33: #{tpu_custom_call.1} parent=1 // pred_fallthru
      _
    // Predicated region
    $region34: #{tpu_custom_call.1} parent=1 // pred_check
      _
    $region35: #{tpu_custom_call.1} parent=1 // pred_check_branch
      %3120 = sbr.rel (0) target = $region37
    $region36: #{tpu_custom_call.1} parent=1 // pred_region
      %3121 = dma.done [#allocation3], 128
    $region37: #{tpu_custom_call.1} parent=1 // pred_fallthru
      _
    %3122 = vsyncpa [#allocation3], 1

</llo_original>
